<compile_context>
chip_gen: v7x
topology: tpu7x:2x2x1
jax: 0.10.0
libtpu: 0.0.40
codegen_flags: <defaults>
</compile_context>

<pallas_src>
import math
import functools

import jax
import jax.numpy as jnp
from jax import lax
from jax.experimental import pallas as pl
from jax.experimental.pallas import tpu as pltpu


def _dwconv_bn_kernel(*refs, TH, W, K, C, LPAD, RC):
    """One (batch, row-tile) grid step: depthwise KxK + 1x1 conv + BN + Hardswish."""
    P = (K - 1) // 2
    xc_ref = refs[0]                          # (1, TH, W, C)   centre row tile
    top_refs = refs[1:1 + P]                  # P x (1, 1, W, C) rows above the tile
    bot_refs = refs[1 + P:1 + 2 * P]          # P x (1, 1, W, C) rows below the tile
    wdw_ref, wpw_ref, shift_ref, o_ref = refs[1 + 2 * P:5 + 2 * P]
    xpad_ref = refs[5 + 2 * P] if P > 0 else None

    ht = pl.program_id(1)
    last = pl.num_programs(1) - 1

    wdw = wdw_ref[...].astype(jnp.float32)    # (K, K, C)
    wpw = wpw_ref[...]                        # (C, C) compute dtype, BN scale folded in
    shift = shift_ref[...]                    # (1, C) f32

    if P > 0:
        dt = xpad_ref.dtype
        rows = TH + 2 * P
        # Zero the aligned left/right pad bands every step (cheap unmasked stores;
        # the scratch is per-core so a "zero once at grid step 0" trick would be
        # wrong under megacore grid sharding).
        xpad_ref[:, 0:LPAD, :] = jnp.zeros((rows, LPAD, C), dt)
        xpad_ref[:, LPAD + W:LPAD + W + LPAD, :] = jnp.zeros((rows, LPAD, C), dt)
        # Halo rows (masked to zero at the image top/bottom edge).
        for j, r in enumerate(top_refs):
            row = r[0, 0]                      # (W, C)
            xpad_ref[j, LPAD:LPAD + W, :] = jnp.where(ht > 0, row, 0.0).astype(dt)
        for j, r in enumerate(bot_refs):
            row = r[0, 0]
            xpad_ref[P + TH + j, LPAD:LPAD + W, :] = jnp.where(ht < last, row, 0.0).astype(dt)
        # Centre rows: aligned, unmasked full-width store (LPAD % 8 == 0, W % 8 == 0).
        xpad_ref[P:P + TH, LPAD:LPAD + W, :] = xc_ref[0]

    # Row-chunked depthwise + pointwise; the f32 accumulator stays register-resident
    # per chunk instead of round-tripping VMEM on every tap.
    for r0 in range(0, TH, RC):
        if P > 0:
            acc = jnp.zeros((RC, W, C), jnp.float32)
            for dw in range(K):
                col0 = LPAD - P + dw
                # One strip load per dw (K relayouts, not K*K); dh shifts below are
                # free leading-dim slices of the loaded strip.
                strip = xpad_ref[r0:r0 + RC + 2 * P, col0:col0 + W, :].astype(jnp.float32)
                for dh in range(K):
                    acc = acc + strip[dh:dh + RC] * wdw[dh, dw]
        else:
            # kernel_size == 1: depthwise degenerates to a per-channel scale.
            acc = xc_ref[0, r0:r0 + RC, :, :].astype(jnp.float32) * wdw[0, 0]

        # Pointwise 1x1 conv (+ folded BN scale) on the MXU; M = RC*W.
        # NOTE: the reshape is a free retiling because W % 8 == 0.
        y = jnp.dot(acc.reshape(RC * W, C).astype(wpw.dtype), wpw,
                    preferred_element_type=jnp.float32)          # (RC*W, C) f32
        y = y + shift                                            # BN shift
        y = y * jnp.clip(y + 3.0, 0.0, 6.0) * (1.0 / 6.0)        # Hardswish
        o_ref[0, r0:r0 + RC, :, :] = y.reshape(RC, W, C).astype(o_ref.dtype)


def _vmem_budgets():
    """Return (vmem_limit_bytes, per-step footprint budget) per TPU generation."""
    try:
        cap = int(pltpu.get_tpu_info().vmem_capacity_bytes)
    except Exception:
        cap = 64 * 1024 * 1024                      # conservative: assume v7x-sized VMEM
    if cap >= 100 * 1024 * 1024:                    # v5e / v6e: 128 MiB physical VMEM
        return 64 * 1024 * 1024, 40 * 1024 * 1024
    return 32 * 1024 * 1024, 20 * 1024 * 1024       # v7x: 64 MiB physical / 32 MiB scoped


def _pick_tile_height(B, H, W, C, P, K, in_size, out_size, cd_size, budget):
    """Largest divisor of H whose full per-step VMEM footprint fits the budget."""
    lpad = ((P + 7) // 8) * 8 if P > 0 else 0
    pad_w = lpad + W + lpad
    weights = K * K * C * 4 + C * C * cd_size + C * 4

    def footprint(d):
        tile = d * W * C
        halo = 2 * P * W * C
        scratch = (d + 2 * P) * pad_w * C * in_size if P > 0 else 0
        return (2 * (tile + halo) * in_size          # double-buffered input + halo rows
                + 2 * tile * out_size                # double-buffered output
                + scratch + 2 * weights)

    divisors = [d for d in range(1, H + 1) if H % d == 0 and d >= max(P, 1)]
    assert divisors, f"H={H} has no valid tile height >= padding {P}"
    fits = [d for d in divisors if footprint(d) <= budget]
    if B < 2:                                        # keep >= 2 grid steps for v7x's 2 TCs
        multi = [d for d in fits if H // d >= 2]
        fits = multi or fits
    return max(fits) if fits else min(divisors)      # always returns a valid divisor


def _pick_row_chunk(th, W):
    """Smallest divisor of th whose chunk gives the MXU M = rc*W >= 256 rows."""
    for d in range(1, th + 1):
        if th % d == 0 and d * W >= 256:
            return d
    return th


def dwconv2d_bn_forward(x_nhwc, w_dw_oihw, w_pw_oihw, gamma, beta,
                        running_mean, running_var, eps=1e-5, *,
                        th=None, compute_dtype=jnp.bfloat16):
    """DWConv2d_BN forward (eval-mode BN), NHWC activations.

    x_nhwc    : (B, H, W, C)
    w_dw_oihw : (C, 1, K, K)  PyTorch depthwise Conv2d weight (groups=C, odd K)
    w_pw_oihw : (C, C, 1, 1)  PyTorch 1x1 Conv2d weight
    """
    B, H, W, C = x_nhwc.shape
    K = w_dw_oihw.shape[-1]
    P = (K - 1) // 2
    assert K % 2 == 1, "odd kernel_size only"
    assert w_dw_oihw.shape[:2] == (C, 1), "depthwise requires in_ch == out_ch"
    assert w_pw_oihw.shape[:2] == (C, C), "pointwise must be (C, C, 1, 1)"
    assert W % 8 == 0, "W must be a multiple of 8 (sublane-aligned reshapes)"
    assert H >= max(P, 1), "image height must cover the conv padding"

    in_size = x_nhwc.dtype.itemsize
    out_size = x_nhwc.dtype.itemsize
    cd_size = jnp.dtype(compute_dtype).itemsize
    vmem_limit, budget = _vmem_budgets()

    if th is None:
        th = _pick_tile_height(B, H, W, C, P, K, in_size, out_size, cd_size, budget)
    assert H % th == 0 and th >= max(P, 1), \
        f"tile height {th} must divide H={H} and be >= {P}"
    nH = H // th
    rc = _pick_row_chunk(th, W)
    lpad = ((P + 7) // 8) * 8 if P > 0 else 0

    # ---- tiny weight / BN glue (f32); BN scale folded into the pointwise weight ----
    w_dw = jnp.transpose(w_dw_oihw[:, 0, :, :], (1, 2, 0)).astype(jnp.float32)   # (K, K, C)
    w_pw = jnp.transpose(w_pw_oihw[:, :, 0, 0], (1, 0)).astype(jnp.float32)      # (Cin, Cout)
    scale = (gamma / jnp.sqrt(running_var + eps)).astype(jnp.float32)
    shift = (beta - running_mean * scale).reshape(1, C).astype(jnp.float32)
    w_pw_s = (w_pw * scale[None, :]).astype(compute_dtype)

    # ---- BlockSpecs: centre tile + 2*P single-row halos of the SAME input array ----
    x_specs = [pl.BlockSpec((1, th, W, C), lambda b, h: (b, h, 0, 0))]
    x_args = [x_nhwc]
    for j in range(P):                       # padded row j      <- global row h*th - (P - j)
        off = P - j
        x_specs.append(pl.BlockSpec(
            (1, 1, W, C),
            (lambda o: (lambda b, h: (b, jnp.maximum(h * th - o, 0), 0, 0)))(off)))
        x_args.append(x_nhwc)
    for j in range(P):                       # padded row P+th+j <- global row h*th + th + j
        x_specs.append(pl.BlockSpec(
            (1, 1, W, C),
            (lambda o: (lambda b, h: (b, jnp.minimum(h * th + th + o, H - 1), 0, 0)))(j)))
        x_args.append(x_nhwc)

    scratch = []
    if P > 0:
        scratch.append(pltpu.VMEM((th + 2 * P, lpad + W + lpad, C), x_nhwc.dtype))

    kern = functools.partial(_dwconv_bn_kernel, TH=th, W=W, K=K, C=C, LPAD=lpad, RC=rc)

    return pl.pallas_call(
        kern,
        out_shape=jax.ShapeDtypeStruct((B, H, W, C), x_nhwc.dtype),
        grid_spec=pltpu.PrefetchScalarGridSpec(
            num_scalar_prefetch=0,
            grid=(B, nH),
            in_specs=x_specs + [
                pl.BlockSpec((K, K, C), lambda b, h: (0, 0, 0)),
                pl.BlockSpec((C, C), lambda b, h: (0, 0)),
                pl.BlockSpec((1, C), lambda b, h: (0, 0)),
            ],
            out_specs=pl.BlockSpec((1, th, W, C), lambda b, h: (b, h, 0, 0)),
            scratch_shapes=scratch),
        compiler_params=pltpu.CompilerParams(
            dimension_semantics=("parallel", "parallel"),
            vmem_limit_bytes=vmem_limit),
    )(*x_args, w_dw, w_pw_s, shift)


def dwconv2d_bn_forward_nchw(x_nchw, *args, **kwargs):
    # Convenience wrapper for PyTorch-layout callers.  Prefer staying NHWC end-to-end:
    # these transposes are two extra HBM passes around a mem-bound op.
    y = dwconv2d_bn_forward(jnp.transpose(x_nchw, (0, 2, 3, 1)), *args, **kwargs)
    return jnp.transpose(y, (0, 3, 1, 2))


def _reference_nhwc(x, w_dw_oihw, w_pw_oihw, gamma, beta, mean, var, eps):
    C = x.shape[-1]
    K = w_dw_oihw.shape[-1]
    P = (K - 1) // 2
    w_dw_hwio = jnp.transpose(w_dw_oihw, (2, 3, 1, 0))   # (K, K, 1, C)
    w_pw_hwio = jnp.transpose(w_pw_oihw, (2, 3, 1, 0))   # (1, 1, C, C)
    y = lax.conv_general_dilated(x, w_dw_hwio, (1, 1), [(P, P), (P, P)],
                                 dimension_numbers=('NHWC', 'HWIO', 'NHWC'),
                                 feature_group_count=C)
    y = lax.conv_general_dilated(y, w_pw_hwio, (1, 1), 'VALID',
                                 dimension_numbers=('NHWC', 'HWIO', 'NHWC'))
    scale = gamma / jnp.sqrt(var + eps)
    shift = beta - mean * scale
    y = y * scale + shift
    return y * jnp.clip(y + 3.0, 0.0, 6.0) / 6.0


if __name__ == "__main__":
    B, H, W, C = 2, 16, 16, 32
    eps = 1e-5
    bn_weight_init = 1.0
    K = 3

    key = jax.random.PRNGKey(0)
    kx, kdw, kpw, kdw1 = jax.random.split(key, 4)

    x = jax.random.normal(kx, (B, H, W, C), jnp.float32)

    # PyTorch-layout weights with the module's init: N(0, sqrt(2 / (kH*kW*out_ch)))
    w_dw = math.sqrt(2.0 / (K * K * C)) * jax.random.normal(kdw, (C, 1, K, K), jnp.float32)
    w_pw = math.sqrt(2.0 / (1 * 1 * C)) * jax.random.normal(kpw, (C, C, 1, 1), jnp.float32)

    # BatchNorm2d defaults (weight=bn_weight_init, bias=0, running stats at init)
    gamma = jnp.full((C,), bn_weight_init, jnp.float32)
    beta = jnp.zeros((C,), jnp.float32)
    running_mean = jnp.zeros((C,), jnp.float32)
    running_var = jnp.ones((C,), jnp.float32)

    ref = _reference_nhwc(x, w_dw, w_pw, gamma, beta, running_mean, running_var, eps)

    # Auto-tiled bf16 MXU path (default configuration).
    out = dwconv2d_bn_forward(x, w_dw, w_pw, gamma, beta, running_mean, running_var, eps)
    out = jax.block_until_ready(out)
    assert out.shape == (B, H, W, C)
    assert jnp.allclose(out, ref, atol=3e-2, rtol=3e-2), "bf16 kernel mismatch vs. reference"

    # f32 compute path, forced 4-row tiles (exercises halo exchange + row chunking).
    out32 = dwconv2d_bn_forward(x, w_dw, w_pw, gamma, beta, running_mean, running_var,
                                eps, th=4, compute_dtype=jnp.float32)
    out32 = jax.block_until_ready(out32)
    assert jnp.allclose(out32, ref, atol=5e-3, rtol=5e-3), "f32 kernel mismatch vs. reference"

    # kernel_size=1 (the module's default): no halo / no padding path.
    w_dw1 = math.sqrt(2.0 / C) * jax.random.normal(kdw1, (C, 1, 1, 1), jnp.float32)
    ref1 = _reference_nhwc(x, w_dw1, w_pw, gamma, beta, running_mean, running_var, eps)
    out1 = dwconv2d_bn_forward(x, w_dw1, w_pw, gamma, beta, running_mean, running_var,
                               eps, compute_dtype=jnp.float32)
    out1 = jax.block_until_ready(out1)
    assert jnp.allclose(out1, ref1, atol=5e-3, rtol=5e-3), "k=1 kernel mismatch vs. reference"

    print("KERNEL_OK")
</pallas_src>

<mosaic_0001>
module attributes {stable_mosaic.version = 11 : i64} {
  func.func @_dwconv_bn_kernel(%arg0: i32, %arg1: i32, %arg2: memref<1x16x16x32xf32, #tpu.memory_space<vmem>>, %arg3: memref<1x1x16x32xf32, #tpu.memory_space<vmem>>, %arg4: memref<1x1x16x32xf32, #tpu.memory_space<vmem>>, %arg5: memref<3x3x32xf32, #tpu.memory_space<vmem>>, %arg6: memref<32x32xbf16, #tpu.memory_space<vmem>>, %arg7: memref<1x32xf32, #tpu.memory_space<vmem>>, %arg8: memref<1x16x16x32xf32, #tpu.memory_space<vmem>>, %arg9: memref<18x32x32xf32, #tpu.memory_space<vmem>>) attributes {dimension_semantics = [#tpu.dimension_semantics<parallel>, #tpu.dimension_semantics<parallel>], iteration_bounds = array<i64: 2, 1>, scalar_prefetch = 0 : i64, scratch_operands = 1 : i64, tpu.core_type = #tpu.core_type<tc>, window_params = [{transform_indices = @transform_0, window_bounds = array<i64: 1, 16, 16, 32>}, {transform_indices = @transform_1, window_bounds = array<i64: 1, 1, 16, 32>}, {transform_indices = @transform_2, window_bounds = array<i64: 1, 1, 16, 32>}, {pipeline_mode = #tpu.pipeline_mode<synchronous>, transform_indices = @transform_3, window_bounds = array<i64: 3, 3, 32>}, {pipeline_mode = #tpu.pipeline_mode<synchronous>, transform_indices = @transform_4, window_bounds = array<i64: 32, 32>}, {pipeline_mode = #tpu.pipeline_mode<synchronous>, transform_indices = @transform_5, window_bounds = array<i64: 1, 32>}, {transform_indices = @transform_6, window_bounds = array<i64: 1, 16, 16, 32>}]} {
    %c0 = arith.constant 0 : index
    %c0_0 = arith.constant 0 : index
    %c0_1 = arith.constant 0 : index
    %0 = vector.load %arg5[%c0, %c0_0, %c0_1] : memref<3x3x32xf32, #tpu.memory_space<vmem>>, vector<3x3x32xf32>
    %c0_2 = arith.constant 0 : index
    %c0_3 = arith.constant 0 : index
    %1 = vector.load %arg6[%c0_2, %c0_3] : memref<32x32xbf16, #tpu.memory_space<vmem>>, vector<32x32xbf16>
    %c0_4 = arith.constant 0 : index
    %c0_5 = arith.constant 0 : index
    %2 = vector.load %arg7[%c0_4, %c0_5] : memref<1x32xf32, #tpu.memory_space<vmem>>, vector<1x32xf32>
    %cst = arith.constant 0.000000e+00 : f32
    %3 = vector.broadcast %cst : f32 to vector<18x8x32xf32>
    %c0_6 = arith.constant 0 : index
    %c0_7 = arith.constant 0 : index
    %c0_8 = arith.constant 0 : index
    %4 = vector.load %arg9[%c0_6, %c0_7, %c0_8] : memref<18x32x32xf32, #tpu.memory_space<vmem>>, vector<18x8x32xf32>
    tpu.vector_store %arg9[%c0_6, %c0_7, %c0_8], %3 {strides = array<i32>} : memref<18x32x32xf32, #tpu.memory_space<vmem>>, vector<18x8x32xf32>,
    %cst_9 = arith.constant 0.000000e+00 : f32
    %5 = vector.broadcast %cst_9 : f32 to vector<18x8x32xf32>
    %c0_10 = arith.constant 0 : index
    %c24 = arith.constant 24 : index
    %c0_11 = arith.constant 0 : index
    %6 = vector.load %arg9[%c0_10, %c24, %c0_11] : memref<18x32x32xf32, #tpu.memory_space<vmem>>, vector<18x8x32xf32>
    tpu.vector_store %arg9[%c0_10, %c24, %c0_11], %5 {strides = array<i32>} : memref<18x32x32xf32, #tpu.memory_space<vmem>>, vector<18x8x32xf32>,
    %c0_12 = arith.constant 0 : index
    %c0_13 = arith.constant 0 : index
    %c0_14 = arith.constant 0 : index
    %c0_15 = arith.constant 0 : index
    %7 = vector.load %arg3[%c0_12, %c0_13, %c0_14, %c0_15] : memref<1x1x16x32xf32, #tpu.memory_space<vmem>>, vector<1x1x16x32xf32>
    %8 = vector.shape_cast %7 : vector<1x1x16x32xf32> to vector<16x32xf32>
    %c0_i32 = arith.constant 0 : i32
    %9 = arith.cmpi sgt, %arg1, %c0_i32 : i32
    %cst_16 = arith.constant 0.000000e+00 : f32
    %10 = vector.broadcast %cst_16 : f32 to vector<16x32xf32>
    %11 = arith.select %9, %8, %10 : vector<16x32xf32>
    %c0_17 = arith.constant 0 : index
    %c8 = arith.constant 8 : index
    %c0_18 = arith.constant 0 : index
    %12 = vector.load %arg9[%c0_17, %c8, %c0_18] : memref<18x32x32xf32, #tpu.memory_space<vmem>>, vector<1x16x32xf32>
    %13 = vector.shape_cast %12 : vector<1x16x32xf32> to vector<16x32xf32>
    %14 = vector.shape_cast %11 : vector<16x32xf32> to vector<1x16x32xf32>
    tpu.vector_store %arg9[%c0_17, %c8, %c0_18], %14 {strides = array<i32>} : memref<18x32x32xf32, #tpu.memory_space<vmem>>, vector<1x16x32xf32>,
    %c0_19 = arith.constant 0 : index
    %c0_20 = arith.constant 0 : index
    %c0_21 = arith.constant 0 : index
    %c0_22 = arith.constant 0 : index
    %15 = vector.load %arg4[%c0_19, %c0_20, %c0_21, %c0_22] : memref<1x1x16x32xf32, #tpu.memory_space<vmem>>, vector<1x1x16x32xf32>
    %16 = vector.shape_cast %15 : vector<1x1x16x32xf32> to vector<16x32xf32>
    %c0_i32_23 = arith.constant 0 : i32
    %17 = arith.cmpi slt, %arg1, %c0_i32_23 : i32
    %cst_24 = arith.constant 0.000000e+00 : f32
    %18 = vector.broadcast %cst_24 : f32 to vector<16x32xf32>
    %19 = arith.select %17, %16, %18 : vector<16x32xf32>
    %c17 = arith.constant 17 : index
    %c8_25 = arith.constant 8 : index
    %c0_26 = arith.constant 0 : index
    %20 = vector.load %arg9[%c17, %c8_25, %c0_26] : memref<18x32x32xf32, #tpu.memory_space<vmem>>, vector<1x16x32xf32>
    %21 = vector.shape_cast %20 : vector<1x16x32xf32> to vector<16x32xf32>
    %22 = vector.shape_cast %19 : vector<16x32xf32> to vector<1x16x32xf32>
    tpu.vector_store %arg9[%c17, %c8_25, %c0_26], %22 {strides = array<i32>} : memref<18x32x32xf32, #tpu.memory_space<vmem>>, vector<1x16x32xf32>,
    %c0_27 = arith.constant 0 : index
    %c0_28 = arith.constant 0 : index
    %c0_29 = arith.constant 0 : index
    %c0_30 = arith.constant 0 : index
    %23 = vector.load %arg2[%c0_27, %c0_28, %c0_29, %c0_30] : memref<1x16x16x32xf32, #tpu.memory_space<vmem>>, vector<1x16x16x32xf32>
    %24 = vector.shape_cast %23 : vector<1x16x16x32xf32> to vector<16x16x32xf32>
    %c1 = arith.constant 1 : index
    %c8_31 = arith.constant 8 : index
    %c0_32 = arith.constant 0 : index
    %25 = vector.load %arg9[%c1, %c8_31, %c0_32] : memref<18x32x32xf32, #tpu.memory_space<vmem>>, vector<16x16x32xf32>
    tpu.vector_store %arg9[%c1, %c8_31, %c0_32], %24 {strides = array<i32>} : memref<18x32x32xf32, #tpu.memory_space<vmem>>, vector<16x16x32xf32>,
    %cst_33 = arith.constant 0.000000e+00 : f32
    %26 = vector.broadcast %cst_33 : f32 to vector<16x16x32xf32>
    %c0_34 = arith.constant 0 : index
    %c7 = arith.constant 7 : index
    %c0_35 = arith.constant 0 : index
    %27 = vector.load %arg9[%c0_34, %c7, %c0_35] : memref<18x32x32xf32, #tpu.memory_space<vmem>>, vector<18x16x32xf32>
    %28 = vector.extract_strided_slice %27 {offsets = [0, 0, 0], sizes = [16, 16, 32], strides = [1, 1, 1]} : vector<18x16x32xf32> to vector<16x16x32xf32>
    %29 = vector.extract_strided_slice %0 {offsets = [0, 0, 0], sizes = [1, 1, 32], strides = [1, 1, 1]} : vector<3x3x32xf32> to vector<1x1x32xf32>
    %30 = vector.shape_cast %29 : vector<1x1x32xf32> to vector<32xf32>
    %31 = vector.shape_cast %30 : vector<32xf32> to vector<1x1x32xf32>
    %32 = vector.broadcast %31 : vector<1x1x32xf32> to vector<16x16x32xf32>
    %33 = arith.mulf %28, %32 : vector<16x16x32xf32>
    %34 = arith.addf %26, %33 : vector<16x16x32xf32>
    %35 = vector.extract_strided_slice %27 {offsets = [1, 0, 0], sizes = [16, 16, 32], strides = [1, 1, 1]} : vector<18x16x32xf32> to vector<16x16x32xf32>
    %36 = vector.extract_strided_slice %0 {offsets = [1, 0, 0], sizes = [1, 1, 32], strides = [1, 1, 1]} : vector<3x3x32xf32> to vector<1x1x32xf32>
    %37 = vector.shape_cast %36 : vector<1x1x32xf32> to vector<32xf32>
    %38 = vector.shape_cast %37 : vector<32xf32> to vector<1x1x32xf32>
    %39 = vector.broadcast %38 : vector<1x1x32xf32> to vector<16x16x32xf32>
    %40 = arith.mulf %35, %39 : vector<16x16x32xf32>
    %41 = arith.addf %34, %40 : vector<16x16x32xf32>
    %42 = vector.extract_strided_slice %27 {offsets = [2, 0, 0], sizes = [16, 16, 32], strides = [1, 1, 1]} : vector<18x16x32xf32> to vector<16x16x32xf32>
    %43 = vector.extract_strided_slice %0 {offsets = [2, 0, 0], sizes = [1, 1, 32], strides = [1, 1, 1]} : vector<3x3x32xf32> to vector<1x1x32xf32>
    %44 = vector.shape_cast %43 : vector<1x1x32xf32> to vector<32xf32>
    %45 = vector.shape_cast %44 : vector<32xf32> to vector<1x1x32xf32>
    %46 = vector.broadcast %45 : vector<1x1x32xf32> to vector<16x16x32xf32>
    %47 = arith.mulf %42, %46 : vector<16x16x32xf32>
    %48 = arith.addf %41, %47 : vector<16x16x32xf32>
    %c0_36 = arith.constant 0 : index
    %c8_37 = arith.constant 8 : index
    %c0_38 = arith.constant 0 : index
    %49 = vector.load %arg9[%c0_36, %c8_37, %c0_38] : memref<18x32x32xf32, #tpu.memory_space<vmem>>, vector<18x16x32xf32>
    %50 = vector.extract_strided_slice %49 {offsets = [0, 0, 0], sizes = [16, 16, 32], strides = [1, 1, 1]} : vector<18x16x32xf32> to vector<16x16x32xf32>
    %51 = vector.extract_strided_slice %0 {offsets = [0, 1, 0], sizes = [1, 1, 32], strides = [1, 1, 1]} : vector<3x3x32xf32> to vector<1x1x32xf32>
    %52 = vector.shape_cast %51 : vector<1x1x32xf32> to vector<32xf32>
    %53 = vector.shape_cast %52 : vector<32xf32> to vector<1x1x32xf32>
    %54 = vector.broadcast %53 : vector<1x1x32xf32> to vector<16x16x32xf32>
    %55 = arith.mulf %50, %54 : vector<16x16x32xf32>
    %56 = arith.addf %48, %55 : vector<16x16x32xf32>
    %57 = vector.extract_strided_slice %49 {offsets = [1, 0, 0], sizes = [16, 16, 32], strides = [1, 1, 1]} : vector<18x16x32xf32> to vector<16x16x32xf32>
    %58 = vector.extract_strided_slice %0 {offsets = [1, 1, 0], sizes = [1, 1, 32], strides = [1, 1, 1]} : vector<3x3x32xf32> to vector<1x1x32xf32>
    %59 = vector.shape_cast %58 : vector<1x1x32xf32> to vector<32xf32>
    %60 = vector.shape_cast %59 : vector<32xf32> to vector<1x1x32xf32>
    %61 = vector.broadcast %60 : vector<1x1x32xf32> to vector<16x16x32xf32>
    %62 = arith.mulf %57, %61 : vector<16x16x32xf32>
    %63 = arith.addf %56, %62 : vector<16x16x32xf32>
    %64 = vector.extract_strided_slice %49 {offsets = [2, 0, 0], sizes = [16, 16, 32], strides = [1, 1, 1]} : vector<18x16x32xf32> to vector<16x16x32xf32>
    %65 = vector.extract_strided_slice %0 {offsets = [2, 1, 0], sizes = [1, 1, 32], strides = [1, 1, 1]} : vector<3x3x32xf32> to vector<1x1x32xf32>
    %66 = vector.shape_cast %65 : vector<1x1x32xf32> to vector<32xf32>
    %67 = vector.shape_cast %66 : vector<32xf32> to vector<1x1x32xf32>
    %68 = vector.broadcast %67 : vector<1x1x32xf32> to vector<16x16x32xf32>
    %69 = arith.mulf %64, %68 : vector<16x16x32xf32>
    %70 = arith.addf %63, %69 : vector<16x16x32xf32>
    %c0_39 = arith.constant 0 : index
    %c9 = arith.constant 9 : index
    %c0_40 = arith.constant 0 : index
    %71 = vector.load %arg9[%c0_39, %c9, %c0_40] : memref<18x32x32xf32, #tpu.memory_space<vmem>>, vector<18x16x32xf32>
    %72 = vector.extract_strided_slice %71 {offsets = [0, 0, 0], sizes = [16, 16, 32], strides = [1, 1, 1]} : vector<18x16x32xf32> to vector<16x16x32xf32>
    %73 = vector.extract_strided_slice %0 {offsets = [0, 2, 0], sizes = [1, 1, 32], strides = [1, 1, 1]} : vector<3x3x32xf32> to vector<1x1x32xf32>
    %74 = vector.shape_cast %73 : vector<1x1x32xf32> to vector<32xf32>
    %75 = vector.shape_cast %74 : vector<32xf32> to vector<1x1x32xf32>
    %76 = vector.broadcast %75 : vector<1x1x32xf32> to vector<16x16x32xf32>
    %77 = arith.mulf %72, %76 : vector<16x16x32xf32>
    %78 = arith.addf %70, %77 : vector<16x16x32xf32>
    %79 = vector.extract_strided_slice %71 {offsets = [1, 0, 0], sizes = [16, 16, 32], strides = [1, 1, 1]} : vector<18x16x32xf32> to vector<16x16x32xf32>
    %80 = vector.extract_strided_slice %0 {offsets = [1, 2, 0], sizes = [1, 1, 32], strides = [1, 1, 1]} : vector<3x3x32xf32> to vector<1x1x32xf32>
    %81 = vector.shape_cast %80 : vector<1x1x32xf32> to vector<32xf32>
    %82 = vector.shape_cast %81 : vector<32xf32> to vector<1x1x32xf32>
    %83 = vector.broadcast %82 : vector<1x1x32xf32> to vector<16x16x32xf32>
    %84 = arith.mulf %79, %83 : vector<16x16x32xf32>
    %85 = arith.addf %78, %84 : vector<16x16x32xf32>
    %86 = vector.extract_strided_slice %71 {offsets = [2, 0, 0], sizes = [16, 16, 32], strides = [1, 1, 1]} : vector<18x16x32xf32> to vector<16x16x32xf32>
    %87 = vector.extract_strided_slice %0 {offsets = [2, 2, 0], sizes = [1, 1, 32], strides = [1, 1, 1]} : vector<3x3x32xf32> to vector<1x1x32xf32>
    %88 = vector.shape_cast %87 : vector<1x1x32xf32> to vector<32xf32>
    %89 = vector.shape_cast %88 : vector<32xf32> to vector<1x1x32xf32>
    %90 = vector.broadcast %89 : vector<1x1x32xf32> to vector<16x16x32xf32>
    %91 = arith.mulf %86, %90 : vector<16x16x32xf32>
    %92 = arith.addf %85, %91 : vector<16x16x32xf32>
    %93 = vector.shape_cast %92 : vector<16x16x32xf32> to vector<256x32xf32>
    %94 = arith.truncf %93 : vector<256x32xf32> to vector<256x32xbf16>
    %cst_41 = arith.constant dense<0.000000e+00> : vector<256x32xf32>
    %95 = tpu.matmul %94, %1, %cst_41 {dimension_numbers = #tpu.dot_dimension_numbers<[1], [0], [0], [1], [0, 0, 1, 1], [], []>} : vector<256x32xbf16>, vector<32x32xbf16>, vector<256x32xf32> -> vector<256x32xf32>
    %96 = vector.broadcast %2 : vector<1x32xf32> to vector<256x32xf32>
    %97 = arith.addf %95, %96 : vector<256x32xf32>
    %cst_42 = arith.constant 3.000000e+00 : f32
    %98 = vector.broadcast %cst_42 : f32 to vector<256x32xf32>
    %99 = arith.addf %97, %98 : vector<256x32xf32>
    %cst_43 = arith.constant 0.000000e+00 : f32
    %cst_44 = arith.constant 6.000000e+00 : f32
    %100 = vector.broadcast %cst_43 : f32 to vector<256x32xf32>
    %101 = arith.maximumf %100, %99 : vector<256x32xf32>
    %102 = vector.broadcast %cst_44 : f32 to vector<256x32xf32>
    %103 = arith.minimumf %102, %101 : vector<256x32xf32>
    %104 = arith.mulf %97, %103 : vector<256x32xf32>
    %cst_45 = arith.constant 0.166666672 : f32
    %105 = vector.broadcast %cst_45 : f32 to vector<256x32xf32>
    %106 = arith.mulf %104, %105 : vector<256x32xf32>
    %107 = vector.shape_cast %106 : vector<256x32xf32> to vector<16x16x32xf32>
    %c0_46 = arith.constant 0 : index
    %c0_47 = arith.constant 0 : index
    %c0_48 = arith.constant 0 : index
    %c0_49 = arith.constant 0 : index
    %108 = vector.load %arg8[%c0_46, %c0_47, %c0_48, %c0_49] : memref<1x16x16x32xf32, #tpu.memory_space<vmem>>, vector<1x16x16x32xf32>
    %109 = vector.shape_cast %108 : vector<1x16x16x32xf32> to vector<16x16x32xf32>
    %110 = vector.shape_cast %107 : vector<16x16x32xf32> to vector<1x16x16x32xf32>
    tpu.vector_store %arg8[%c0_46, %c0_47, %c0_48, %c0_49], %110 {strides = array<i32>} : memref<1x16x16x32xf32, #tpu.memory_space<vmem>>, vector<1x16x16x32xf32>,
    return
  }
  func.func @transform_0(%arg0: i32, %arg1: i32) -> (i32, i32, i32, i32) {
    %c0_i32 = arith.constant 0 : i32
    %c0_i32_0 = arith.constant 0 : i32
    %c0_i32_1 = arith.constant 0 : i32
    return %arg0, %arg1, %c0_i32, %c0_i32_0 : i32, i32, i32, i32
  }
  func.func @transform_1(%arg0: i32, %arg1: i32) -> (i32, i32, i32, i32) {
    %c16_i32 = arith.constant 16 : i32
    %0 = arith.muli %arg1, %c16_i32 : i32
    %c1_i32 = arith.constant 1 : i32
    %1 = arith.subi %0, %c1_i32 : i32
    %c0_i32 = arith.constant 0 : i32
    %2 = arith.maxsi %1, %c0_i32 : i32
    %c0_i32_0 = arith.constant 0 : i32
    %c0_i32_1 = arith.constant 0 : i32
    %c0_i32_2 = arith.constant 0 : i32
    return %arg0, %2, %c0_i32_0, %c0_i32_1 : i32, i32, i32, i32
  }
  func.func @transform_2(%arg0: i32, %arg1: i32) -> (i32, i32, i32, i32) {
    %c16_i32 = arith.constant 16 : i32
    %0 = arith.muli %arg1, %c16_i32 : i32
    %c16_i32_0 = arith.constant 16 : i32
    %1 = arith.addi %0, %c16_i32_0 : i32
    %c0_i32 = arith.constant 0 : i32
    %2 = arith.addi %1, %c0_i32 : i32
    %c15_i32 = arith.constant 15 : i32
    %3 = arith.minsi %2, %c15_i32 : i32
    %c0_i32_1 = arith.constant 0 : i32
    %c0_i32_2 = arith.constant 0 : i32
    %c0_i32_3 = arith.constant 0 : i32
    return %arg0, %3, %c0_i32_1, %c0_i32_2 : i32, i32, i32, i32
  }
  func.func @transform_3(%arg0: i32, %arg1: i32) -> (i32, i32, i32) {
    %c0_i32 = arith.constant 0 : i32
    %c0_i32_0 = arith.constant 0 : i32
    %c0_i32_1 = arith.constant 0 : i32
    %c0_i32_2 = arith.constant 0 : i32
    return %c0_i32, %c0_i32_0, %c0_i32_1 : i32, i32, i32
  }
  func.func @transform_4(%arg0: i32, %arg1: i32) -> (i32, i32) {
    %c0_i32 = arith.constant 0 : i32
    %c0_i32_0 = arith.constant 0 : i32
    %c0_i32_1 = arith.constant 0 : i32
    return %c0_i32, %c0_i32_0 : i32, i32
  }
  func.func @transform_5(%arg0: i32, %arg1: i32) -> (i32, i32) {
    %c0_i32 = arith.constant 0 : i32
    %c0_i32_0 = arith.constant 0 : i32
    %c0_i32_1 = arith.constant 0 : i32
    return %c0_i32, %c0_i32_0 : i32, i32
  }
  func.func @transform_6(%arg0: i32, %arg1: i32) -> (i32, i32, i32, i32) {
    %c0_i32 = arith.constant 0 : i32
    %c0_i32_0 = arith.constant 0 : i32
    %c0_i32_1 = arith.constant 0 : i32
    return %arg0, %arg1, %c0_i32, %c0_i32_0 : i32, i32, i32, i32
  }
}

</mosaic_0001>

<llo_original>
// kernel: tpu_custom_call.1
$region0: #{tpu_custom_call.1}
  #allocation0 [shape = 'u32[]', space=smem, size = 0x4, offset = 0x4, fixed_abs, tag = 'smem constant byte address 0x4 - core index']
  #allocation1 [shape = 'u32[144,128]{1,0:T(1,128)}', space=vmem, size = 0x12000, scoped, tag = 'internal scratch']
  #allocation2 [shape = 'f32[18,32,32]{2,1,0:T(8,128)}', space=vmem, size = 0x48000, scoped, tag = 'scratch operand']
  %s0 = inlined_call_operand.hbm [shape: f32[2,16,16,32], index: 0, kind: input, shape index: {}]
  %s1 = inlined_call_operand.hbm [shape: f32[2,16,16,32], index: 1, kind: input, shape index: {}]
  %s2 = inlined_call_operand.hbm [shape: f32[2,16,16,32], index: 2, kind: input, shape index: {}]
  %s3 = inlined_call_operand.hbm [shape: f32[3,3,32], index: 3, kind: input, shape index: {}]
  %s4 = inlined_call_operand.hbm [shape: bf16[32,32], index: 4, kind: input, shape index: {}]
  %s5 = inlined_call_operand.vmem [shape: f32[1,32], index: 5, kind: input, shape index: {}]
  %s6 = inlined_call_operand.hbm [shape: f32[2,16,16,32], index: 6, kind: output, shape index: {}]
  %s7 = sld [smem:[#allocation0]]
  $region77: #{tpu_custom_call.1} parent=0
    _
  %s9 = ssub.s32 1, %s7
  %s10 = scalar_select 0, %s9, %s7
  $region1: #{tpu_custom_call.1} parent=0
    #allocation3 [shape = 'u8[262144]{0}', space=vmem, size = 0x40000, scoped, tag = 'input window, operand 0']
    #allocation4 [shape = 's32[2]{0}', space=sflag, size = 0x8, scoped, tag = 'scoped memory for tpu_custom_call.1']
    #allocation5 [shape = 's32[2]{0}', space=sflag, size = 0x8, scoped, tag = 'scoped memory for tpu_custom_call.1']
    #allocation6 [shape = 'u8[16384]{0}', space=vmem, size = 0x4000, scoped, tag = 'input window, operand 1']
    #allocation7 [shape = 's32[2]{0}', space=sflag, size = 0x8, scoped, tag = 'scoped memory for tpu_custom_call.1']
    #allocation8 [shape = 'u8[16384]{0}', space=vmem, size = 0x4000, scoped, tag = 'input window, operand 2']
    #allocation9 [shape = 'u8[6144]{0}', space=vmem, size = 0x1800, scoped, tag = 'input window, operand 3, single buffered']
    #allocation10 [shape = 's32[1]{0}', space=sflag, size = 0x4, scoped, tag = 'scoped memory for tpu_custom_call.1']
    #allocation11 [shape = 'u8[8192]{0}', space=vmem, size = 0x2000, scoped, tag = 'input window, operand 4, single buffered']
    #allocation12 [shape = 'u8[262144]{0}', space=vmem, size = 0x40000, scoped, tag = 'output window, operand 0']
    %11 = vsyncpa [#allocation4], 0
    %s12 = scalar_lea.sflag [#allocation4], 1
    %13 = vsyncpa %s12, 0
    %14 = vsyncpa [#allocation7], 0
    %s15 = scalar_lea.sflag [#allocation7], 1
    %16 = vsyncpa %s15, 0
    %17 = vsyncpa [#allocation10], 0
    %18 = vsyncpa [#allocation5], 0
    %s19 = scalar_lea.sflag [#allocation5], 1
    %20 = vsyncpa %s19, 0
    loop: start=0, step=1, limit=4
    $region2: #{tpu_custom_call.1} parent=1 // loop_pre_header
      _
    $region3: #{tpu_custom_call.1} parent=1 // loop_header
      %s22 = sphi 0, %s26
      %p23 = scmp.ge.s32.totalorder %s22, 4
      %s29 = sphi 0, %s41
      %s30 = sphi 0, %s37
      %s31 = sphi 0, %s29
      %s32 = sphi 0, %s30
      %s33 = sphi 0, %s31
      %s34 = sphi 0, %s32
      %s46 = sphi 0, %s48
      %s49 = sphi 0, %s46
      %s50 = sphi 0, %s49
      %s66 = sphi 0, %s50
      %s82 = sphi 0, %s84
      %s85 = sphi 0, %s82
      %s86 = sphi 0, %s85
      %s102 = sphi 0, %s86
      %s118 = sphi 0, %s120
      %s121 = sphi 0, %s118
      %s122 = sphi 0, %s121
      %s138 = sphi 0, %s122
      %s142 = sphi 0, %s142
      %s144 = sphi 0, %s142
      %s145 = sphi 0, %s144
      %s159 = sphi 0, %s145
      %s163 = sphi 0, %s163
      %s165 = sphi 0, %s163
      %s166 = sphi 0, %s165
      %s180 = sphi 0, %s166
      %s184 = sphi 0, %s184
      %s186 = sphi 0, %s184
      %s187 = sphi 0, %s186
      %s201 = sphi 0, %s187
      %s209 = sphi 0, %s211
      %s212 = sphi 0, %s209
      %s213 = sphi 0, %s212
      %s229 = sphi 0, %s213
    $region4: #{tpu_custom_call.1} parent=1 // loop_header_branch
      %25 = sbr.rel (%p23) target = $region8
    $region5: #{tpu_custom_call.1} parent=1 // loop_body
      %s27 = ssub.s32 %s22, 1
      %s28 = ssub.s32 %s22, 2
      %s35 = sadd.s32 1, %s30
      %p36 = scmp.ge.s32.totalorder %s35, 1
      %s37 = scalar_select %p36, 0, %s35
      %s38 = sadd.s32 1, %s29
      %s39 = scalar_select %p36, %s38, %s29
      %p40 = scmp.ge.s32.totalorder %s39, 2
      %s41 = scalar_select %p40, 0, %s39
      %s42 = ssub.s32 %s29, %s41
      %s43 = ssub.s32 %s30, %s37
      %s44 = sor.u32 %s42, %s43
      %p45 = scmp.eq.s32.totalorder %s44, 0
      %s47 = sadd.s32 %s46, 1
      %s48 = scalar_select %p45, %s46, %s47
      %p51 = pneg %p45
      %p52 = scmp.eq.s32.totalorder %s22, 1
      %p53 = por %p51, %p52
      %p54 = scmp.ne.s32.totalorder %s46, %s49
      %p55 = scmp.eq.s32.totalorder %s22, 0
      %p56 = por %p54, %p55
      %p57 = scmp.ne.s32.totalorder %s46, %s49
      %p58 = scmp.eq.s32.totalorder %s27, 1
      %p59 = por %p57, %p58
      %p60 = scmp.ne.s32.totalorder %s49, %s50
      %p61 = scmp.eq.s32.totalorder %s27, 0
      %p62 = por %p60, %p61
      %p63 = scmp.ne.s32.totalorder %s49, %s50
      %p64 = scmp.eq.s32.totalorder %s28, 1
      %p65 = por %p63, %p64
      %p67 = scmp.ne.s32.totalorder %s50, %s66
      %p68 = scmp.eq.s32.totalorder %s28, 0
      %p69 = por %p67, %p68
      %s70 = smul.u32 %s30, 16
      %s71 = ssub.s32 %s70, 1
      %p72 = scmp.gt.s32.totalorder %s71, 0
      %s73 = scalar_select %p72, %s71, 0
      %s74 = smul.u32 %s37, 16
      %s75 = ssub.s32 %s74, 1
      %p76 = scmp.gt.s32.totalorder %s75, 0
      %s77 = scalar_select %p76, %s75, 0
      %s78 = ssub.s32 %s29, %s41
      %s79 = ssub.s32 %s73, %s77
      %s80 = sor.u32 %s78, %s79
      %p81 = scmp.eq.s32.totalorder %s80, 0
      %s83 = sadd.s32 %s82, 1
      %s84 = scalar_select %p81, %s82, %s83
      %p87 = pneg %p81
      %p88 = scmp.eq.s32.totalorder %s22, 1
      %p89 = por %p87, %p88
      %p90 = scmp.ne.s32.totalorder %s82, %s85
      %p91 = scmp.eq.s32.totalorder %s22, 0
      %p92 = por %p90, %p91
      %p93 = scmp.ne.s32.totalorder %s82, %s85
      %p94 = scmp.eq.s32.totalorder %s27, 1
      %p95 = por %p93, %p94
      %p96 = scmp.ne.s32.totalorder %s85, %s86
      %p97 = scmp.eq.s32.totalorder %s27, 0
      %p98 = por %p96, %p97
      %p99 = scmp.ne.s32.totalorder %s85, %s86
      %p100 = scmp.eq.s32.totalorder %s28, 1
      %p101 = por %p99, %p100
      %p103 = scmp.ne.s32.totalorder %s86, %s102
      %p104 = scmp.eq.s32.totalorder %s28, 0
      %p105 = por %p103, %p104
      %s106 = smul.u32 %s30, 16
      %s107 = sadd.s32 %s106, 16
      %p108 = scmp.lt.s32.totalorder %s107, 15
      %s109 = scalar_select %p108, %s107, 15
      %s110 = smul.u32 %s37, 16
      %s111 = sadd.s32 %s110, 16
      %p112 = scmp.lt.s32.totalorder %s111, 15
      %s113 = scalar_select %p112, %s111, 15
      %s114 = ssub.s32 %s29, %s41
      %s115 = ssub.s32 %s109, %s113
      %s116 = sor.u32 %s114, %s115
      %p117 = scmp.eq.s32.totalorder %s116, 0
      %s119 = sadd.s32 %s118, 1
      %s120 = scalar_select %p117, %s118, %s119
      %p123 = pneg %p117
      %p124 = scmp.eq.s32.totalorder %s22, 1
      %p125 = por %p123, %p124
      %p126 = scmp.ne.s32.totalorder %s118, %s121
      %p127 = scmp.eq.s32.totalorder %s22, 0
      %p128 = por %p126, %p127
      %p129 = scmp.ne.s32.totalorder %s118, %s121
      %p130 = scmp.eq.s32.totalorder %s27, 1
      %p131 = por %p129, %p130
      %p132 = scmp.ne.s32.totalorder %s121, %s122
      %p133 = scmp.eq.s32.totalorder %s27, 0
      %p134 = por %p132, %p133
      %p135 = scmp.ne.s32.totalorder %s121, %s122
      %p136 = scmp.eq.s32.totalorder %s28, 1
      %p137 = por %p135, %p136
      %p139 = scmp.ne.s32.totalorder %s122, %s138
      %p140 = scmp.eq.s32.totalorder %s28, 0
      %p141 = por %p139, %p140
      %s143 = sadd.s32 %s142, 1
      %p146 = scmp.eq.s32.totalorder %s22, 1
      %p147 = scmp.ne.s32.totalorder %s142, %s144
      %p148 = scmp.eq.s32.totalorder %s22, 0
      %p149 = por %p147, %p148
      %p150 = scmp.ne.s32.totalorder %s142, %s144
      %p151 = scmp.eq.s32.totalorder %s27, 1
      %p152 = por %p150, %p151
      %p153 = scmp.ne.s32.totalorder %s144, %s145
      %p154 = scmp.eq.s32.totalorder %s27, 0
      %p155 = por %p153, %p154
      %p156 = scmp.ne.s32.totalorder %s144, %s145
      %p157 = scmp.eq.s32.totalorder %s28, 1
      %p158 = por %p156, %p157
      %p160 = scmp.ne.s32.totalorder %s145, %s159
      %p161 = scmp.eq.s32.totalorder %s28, 0
      %p162 = por %p160, %p161
      %s164 = sadd.s32 %s163, 1
      %p167 = scmp.eq.s32.totalorder %s22, 1
      %p168 = scmp.ne.s32.totalorder %s163, %s165
      %p169 = scmp.eq.s32.totalorder %s22, 0
      %p170 = por %p168, %p169
      %p171 = scmp.ne.s32.totalorder %s163, %s165
      %p172 = scmp.eq.s32.totalorder %s27, 1
      %p173 = por %p171, %p172
      %p174 = scmp.ne.s32.totalorder %s165, %s166
      %p175 = scmp.eq.s32.totalorder %s27, 0
      %p176 = por %p174, %p175
      %p177 = scmp.ne.s32.totalorder %s165, %s166
      %p178 = scmp.eq.s32.totalorder %s28, 1
      %p179 = por %p177, %p178
      %p181 = scmp.ne.s32.totalorder %s166, %s180
      %p182 = scmp.eq.s32.totalorder %s28, 0
      %p183 = por %p181, %p182
      %s185 = sadd.s32 %s184, 1
      %p188 = scmp.eq.s32.totalorder %s22, 1
      %p189 = scmp.ne.s32.totalorder %s184, %s186
      %p190 = scmp.eq.s32.totalorder %s22, 0
      %p191 = por %p189, %p190
      %p192 = scmp.ne.s32.totalorder %s184, %s186
      %p193 = scmp.eq.s32.totalorder %s27, 1
      %p194 = por %p192, %p193
      %p195 = scmp.ne.s32.totalorder %s186, %s187
      %p196 = scmp.eq.s32.totalorder %s27, 0
      %p197 = por %p195, %p196
      %p198 = scmp.ne.s32.totalorder %s186, %s187
      %p199 = scmp.eq.s32.totalorder %s28, 1
      %p200 = por %p198, %p199
      %p202 = scmp.ne.s32.totalorder %s187, %s201
      %p203 = scmp.eq.s32.totalorder %s28, 0
      %p204 = por %p202, %p203
      %s205 = ssub.s32 %s29, %s41
      %s206 = ssub.s32 %s30, %s37
      %s207 = sor.u32 %s205, %s206
      %p208 = scmp.eq.s32.totalorder %s207, 0
      %s210 = sadd.s32 %s209, 1
      %s211 = scalar_select %p208, %s209, %s210
      %p214 = pneg %p208
      %p215 = scmp.eq.s32.totalorder %s22, 1
      %p216 = por %p214, %p215
      %p217 = scmp.ne.s32.totalorder %s209, %s212
      %p218 = scmp.eq.s32.totalorder %s22, 0
      %p219 = por %p217, %p218
      %p220 = scmp.ne.s32.totalorder %s209, %s212
      %p221 = scmp.eq.s32.totalorder %s27, 1
      %p222 = por %p220, %p221
      %p223 = scmp.ne.s32.totalorder %s212, %s213
      %p224 = scmp.eq.s32.totalorder %s27, 0
      %p225 = por %p223, %p224
      %p226 = scmp.ne.s32.totalorder %s212, %s213
      %p227 = scmp.eq.s32.totalorder %s28, 1
      %p228 = por %p226, %p227
      %p230 = scmp.ne.s32.totalorder %s213, %s229
      %p231 = scmp.eq.s32.totalorder %s28, 0
      %p232 = por %p230, %p231
      %p233 = scmp.le.s32.totalorder 1, %s22
      %p234 = scmp.lt.s32.totalorder %s22, 3
      %p235 = pnand %p233, %p234
      %p236 = pneg %p235
      // Predicated region
      $region9: #{tpu_custom_call.1} parent=5 // pred_check
        _
      $region10: #{tpu_custom_call.1} parent=5 // pred_check_branch
        %238 = sbr.rel (%p235) target = $region12
      $region11: #{tpu_custom_call.1} parent=5 // pred_region
        %s239 = ssub.s32 %s22, 1
        // Predicated region
        $region13: #{tpu_custom_call.1} parent=11 // pred_check
          %p240 = pneg %p155
        $region14: #{tpu_custom_call.1} parent=11 // pred_check_branch
          %242 = sbr.rel (%p240) target = $region16
        $region15: #{tpu_custom_call.1} parent=11 // pred_region
          %s244 = ssub.s32 192, 192
          %245 = vsyncadd [#allocation10], %s244
          %s246 = sshll.u32 [#allocation9], 4
          %s247 = int_to_ptr.vmem [resolvable:$true] %s246
          %252 = dma.hbm_to_vmem [thread:$0]  %s3, 192, %s247, [#allocation10], 64, 64, 4
        $region16: #{tpu_custom_call.1} parent=11 // pred_fallthru
          _
        // Predicated region
        $region17: #{tpu_custom_call.1} parent=11 // pred_check
          %p253 = pneg %p176
        $region18: #{tpu_custom_call.1} parent=11 // pred_check_branch
          %255 = sbr.rel (%p253) target = $region20
        $region19: #{tpu_custom_call.1} parent=11 // pred_region
          %s257 = ssub.s32 256, 256
          %258 = vsyncadd [#allocation10], %s257
          %s259 = sshll.u32 [#allocation11], 4
          %s260 = int_to_ptr.vmem [resolvable:$true] %s259
          %265 = dma.hbm_to_vmem [thread:$0]  %s4, 256, %s260, [#allocation10], 64, 64, 4
        $region20: #{tpu_custom_call.1} parent=11 // pred_fallthru
          _
        // Predicated region
        $region21: #{tpu_custom_call.1} parent=11 // pred_check
          %p266 = pneg %p197
        $region22: #{tpu_custom_call.1} parent=11 // pred_check_branch
          %268 = sbr.rel (%p266) target = $region24
        $region23: #{tpu_custom_call.1} parent=11 // pred_region
          _
        $region24: #{tpu_custom_call.1} parent=11 // pred_fallthru
          _
      $region12: #{tpu_custom_call.1} parent=5 // pred_fallthru
        _
      %p269 = scmp.lt.s32.totalorder %s22, 2
      // Predicated region
      $region25: #{tpu_custom_call.1} parent=5 // pred_check
        %p270 = pneg %p269
      $region26: #{tpu_custom_call.1} parent=5 // pred_check_branch
        %272 = sbr.rel (%p270) target = $region28
      $region27: #{tpu_custom_call.1} parent=5 // pred_region
        // Predicated region
        $region29: #{tpu_custom_call.1} parent=27 // pred_check
          %p273 = pneg %p56
        $region30: #{tpu_custom_call.1} parent=27 // pred_check_branch
          %275 = sbr.rel (%p273) target = $region32
        $region31: #{tpu_custom_call.1} parent=27 // pred_region
          %s276 = sand.u32 %s46, 1
          %s277 = scalar_lea.sflag [#allocation4], %s276
          %s278 = sand.u32 %s46, 1
          %s279 = smul.addr %s278, 256
          %s280 = scalar_lea.vmem [#allocation3], %s279
          %s281 = smul.u32 16, %s30
          %s283 = ssub.s32 4096, 4096
          %284 = vsyncadd %s277, %s283
          %s285 = smul.addr %s281, 2
          %s286 = smul.addr %s29, 32
          %s287 = sadd.s32 %s285, %s286
          %s288 = smul.addr %s287, 128
          %s289 = scalar_lea.hbm %s0, %s288
          %s290 = sshll.u32 %s280, 4
          %s291 = int_to_ptr.vmem [resolvable:$true] %s290
          %296 = dma.hbm_to_vmem [thread:$0]  %s289, 4096, %s291, %s277, 128, 128, 8
        $region32: #{tpu_custom_call.1} parent=27 // pred_fallthru
          _
        // Predicated region
        $region33: #{tpu_custom_call.1} parent=27 // pred_check
          %p297 = pneg %p92
        $region34: #{tpu_custom_call.1} parent=27 // pred_check_branch
          %299 = sbr.rel (%p297) target = $region36
        $region35: #{tpu_custom_call.1} parent=27 // pred_region
          %s300 = sand.u32 %s22, 1
          %s301 = scalar_lea.sflag [#allocation7], %s300
          %s302 = sand.u32 %s82, 1
          %s303 = smul.addr %s302, 16
          %s304 = scalar_lea.vmem [#allocation6], %s303
          %s305 = smul.u32 %s30, 16
          %s306 = ssub.s32 %s305, 1
          %p307 = scmp.gt.s32.totalorder %s306, 0
          %s308 = scalar_select %p307, %s306, 0
          %s310 = ssub.s32 256, 256
          %311 = vsyncadd %s301, %s310
          %s312 = smul.addr %s308, 2
          %s313 = smul.addr %s29, 32
          %s314 = sadd.s32 %s312, %s313
          %s315 = smul.addr %s314, 128
          %s316 = scalar_lea.hbm %s1, %s315
          %s317 = sshll.u32 %s304, 4
          %s318 = int_to_ptr.vmem [resolvable:$true] %s317
          %323 = dma.hbm_to_vmem [thread:$0]  %s316, 256, %s318, %s301, 128, 128, 8
        $region36: #{tpu_custom_call.1} parent=27 // pred_fallthru
          _
        // Predicated region
        $region37: #{tpu_custom_call.1} parent=27 // pred_check
          %p324 = pneg %p128
        $region38: #{tpu_custom_call.1} parent=27 // pred_check_branch
          %326 = sbr.rel (%p324) target = $region40
        $region39: #{tpu_custom_call.1} parent=27 // pred_region
          %s327 = sand.u32 %s22, 1
          %s328 = scalar_lea.sflag [#allocation7], %s327
          %s329 = sand.u32 %s118, 1
          %s330 = smul.addr %s329, 16
          %s331 = scalar_lea.vmem [#allocation8], %s330
          %s332 = smul.u32 %s30, 16
          %s333 = sadd.s32 %s332, 16
          %p334 = scmp.lt.s32.totalorder %s333, 15
          %s335 = scalar_select %p334, %s333, 15
          %s337 = ssub.s32 256, 256
          %338 = vsyncadd %s328, %s337
          %s339 = smul.addr %s335, 2
          %s340 = smul.addr %s29, 32
          %s341 = sadd.s32 %s339, %s340
          %s342 = smul.addr %s341, 128
          %s343 = scalar_lea.hbm %s2, %s342
          %s344 = sshll.u32 %s331, 4
          %s345 = int_to_ptr.vmem [resolvable:$true] %s344
          %350 = dma.hbm_to_vmem [thread:$0]  %s343, 256, %s345, %s328, 128, 128, 8
        $region40: #{tpu_custom_call.1} parent=27 // pred_fallthru
          _
      $region28: #{tpu_custom_call.1} parent=5 // pred_fallthru
        _
      %p351 = scmp.le.s32.totalorder 1, %s22
      %p352 = scmp.lt.s32.totalorder %s22, 3
      %p353 = pnand %p351, %p352
      %p354 = pneg %p353
      // Predicated region
      $region41: #{tpu_custom_call.1} parent=5 // pred_check
        _
      $region42: #{tpu_custom_call.1} parent=5 // pred_check_branch
        %356 = sbr.rel (%p353) target = $region44
      $region43: #{tpu_custom_call.1} parent=5 // pred_region
        %s357 = ssub.s32 %s22, 1
        %s358 = sand.u32 %s49, 1
        %s359 = scalar_lea.sflag [#allocation4], %s358
        %s360 = sand.u32 %s49, 1
        %s361 = smul.addr %s360, 256
        %s362 = scalar_lea.vmem [#allocation3], %s361
        // Predicated region
        $region45: #{tpu_custom_call.1} parent=43 // pred_check
          %p363 = pneg %p62
        $region46: #{tpu_custom_call.1} parent=43 // pred_check_branch
          %365 = sbr.rel (%p363) target = $region48
        $region47: #{tpu_custom_call.1} parent=43 // pred_region
          %366 = dma.done %s359, 4096
        $region48: #{tpu_custom_call.1} parent=43 // pred_fallthru
          _
        %s367 = sand.u32 %s27, 1
        %s368 = scalar_lea.sflag [#allocation7], %s367
        %s369 = sand.u32 %s85, 1
        %s370 = smul.addr %s369, 16
        %s371 = scalar_lea.vmem [#allocation6], %s370
        // Predicated region
        $region49: #{tpu_custom_call.1} parent=43 // pred_check
          %p372 = pneg %p98
        $region50: #{tpu_custom_call.1} parent=43 // pred_check_branch
          %374 = sbr.rel (%p372) target = $region52
        $region51: #{tpu_custom_call.1} parent=43 // pred_region
          %375 = dma.done %s368, 256
        $region52: #{tpu_custom_call.1} parent=43 // pred_fallthru
          _
        %s376 = sand.u32 %s27, 1
        %s377 = scalar_lea.sflag [#allocation7], %s376
        %s378 = sand.u32 %s121, 1
        %s379 = smul.addr %s378, 16
        %s380 = scalar_lea.vmem [#allocation8], %s379
        // Predicated region
        $region53: #{tpu_custom_call.1} parent=43 // pred_check
          %p381 = pneg %p134
        $region54: #{tpu_custom_call.1} parent=43 // pred_check_branch
          %383 = sbr.rel (%p381) target = $region56
        $region55: #{tpu_custom_call.1} parent=43 // pred_region
          %384 = dma.done %s377, 256
        $region56: #{tpu_custom_call.1} parent=43 // pred_fallthru
          _
        // Predicated region
        $region57: #{tpu_custom_call.1} parent=43 // pred_check
          %p385 = pneg %p155
        $region58: #{tpu_custom_call.1} parent=43 // pred_check_branch
          %387 = sbr.rel (%p385) target = $region60
        $region59: #{tpu_custom_call.1} parent=43 // pred_region
          %388 = dma.done [#allocation10], 192
        $region60: #{tpu_custom_call.1} parent=43 // pred_fallthru
          _
        // Predicated region
        $region61: #{tpu_custom_call.1} parent=43 // pred_check
          %p389 = pneg %p176
        $region62: #{tpu_custom_call.1} parent=43 // pred_check_branch
          %391 = sbr.rel (%p389) target = $region64
        $region63: #{tpu_custom_call.1} parent=43 // pred_region
          %392 = dma.done [#allocation10], 256
        $region64: #{tpu_custom_call.1} parent=43 // pred_fallthru
          _
        %s393 = sand.u32 %s49, 1
        %s394 = scalar_lea.sflag [#allocation4], %s393
        %s395 = sand.u32 %s49, 1
        %s396 = smul.addr %s395, 256
        %s397 = scalar_lea.vmem [#allocation3], %s396
        %p398 = pneg %p62
        %p399 = pneg %p59
        %s400 = sand.u32 %s27, 1
        %s401 = scalar_lea.sflag [#allocation7], %s400
        %s402 = sand.u32 %s85, 1
        %s403 = smul.addr %s402, 16
        %s404 = scalar_lea.vmem [#allocation6], %s403
        %p405 = pneg %p98
        %p406 = pneg %p95
        %s407 = sand.u32 %s27, 1
        %s408 = scalar_lea.sflag [#allocation7], %s407
        %s409 = sand.u32 %s121, 1
        %s410 = smul.addr %s409, 16
        %s411 = scalar_lea.vmem [#allocation8], %s410
        %p412 = pneg %p134
        %p413 = pneg %p131
        %p414 = pneg %p155
        %p415 = pneg %p152
        %p416 = pneg %p176
        %p417 = pneg %p173
        %p418 = pneg %p197
        %p419 = pneg %p194
        %p420 = pneg %p225
        %p421 = pneg %p222
        %s422 = sand.u32 %s212, 1
        %s423 = scalar_lea.sflag [#allocation5], %s422
        %s424 = sand.u32 %s212, 1
        %s425 = smul.addr %s424, 256
        %s426 = scalar_lea.vmem [#allocation12], %s425
        %s427 = smul.u32 16, %s32
        %s428 = smul.u32 %s32, 16
        %s429 = ssub.s32 %s428, 1
        %p430 = scmp.gt.s32.totalorder %s429, 0
        %s431 = scalar_select %p430, %s429, 0
        %s432 = smul.u32 %s32, 16
        %s433 = sadd.s32 %s432, 16
        %p434 = scmp.lt.s32.totalorder %s433, 15
        %s435 = scalar_select %p434, %s433, 15
        %s436 = smul.u32 16, %s32
        %v438 = vld [vmem:[#allocation9] sm:$0x7]
        %v439 = vld [vmem:[#allocation9 + $0x4] sm:$0x7]
        %v440 = vld [vmem:[#allocation9 + $0x8] sm:$0x7]
        %v441 = vld [vmem:[#allocation11] sm:$0xf]
        %v442 = vld [vmem:[#allocation11 + $0x4] sm:$0xf]
        %v443 = vld [vmem:[#allocation11 + $0x8] sm:$0xf]
        %v444 = vld [vmem:[#allocation11 + $0xc] sm:$0xf]
        %v445 = vld [vmem:[%s5] sm:$0x1]
        %vm446 = vcmask 261120
        %447 = vst.msk [vmem:[#allocation2] sm:$0xff] %vm446, 0.0
        %448 = vst.msk [vmem:[#allocation2 + $0x20] sm:$0xff] %vm446, 0.0
        %449 = vst.msk [vmem:[#allocation2 + $0x40] sm:$0xff] %vm446, 0.0
        %450 = vst.msk [vmem:[#allocation2 + $0x60] sm:$0xff] %vm446, 0.0
        %451 = vst.msk [vmem:[#allocation2 + $0x80] sm:$0xff] %vm446, 0.0
        %452 = vst.msk [vmem:[#allocation2 + $0xa0] sm:$0xff] %vm446, 0.0
        %453 = vst.msk [vmem:[#allocation2 + $0xc0] sm:$0xff] %vm446, 0.0
        %454 = vst.msk [vmem:[#allocation2 + $0xe0] sm:$0xff] %vm446, 0.0
        %455 = vst.msk [vmem:[#allocation2 + $0x100] sm:$0xff] %vm446, 0.0
        %456 = vst.msk [vmem:[#allocation2 + $0x120] sm:$0xff] %vm446, 0.0
        %457 = vst.msk [vmem:[#allocation2 + $0x140] sm:$0xff] %vm446, 0.0
        %458 = vst.msk [vmem:[#allocation2 + $0x160] sm:$0xff] %vm446, 0.0
        %459 = vst.msk [vmem:[#allocation2 + $0x180] sm:$0xff] %vm446, 0.0
        %460 = vst.msk [vmem:[#allocation2 + $0x1a0] sm:$0xff] %vm446, 0.0
        %461 = vst.msk [vmem:[#allocation2 + $0x1c0] sm:$0xff] %vm446, 0.0
        %462 = vst.msk [vmem:[#allocation2 + $0x1e0] sm:$0xff] %vm446, 0.0
        %463 = vst.msk [vmem:[#allocation2 + $0x200] sm:$0xff] %vm446, 0.0
        %464 = vst.msk [vmem:[#allocation2 + $0x220] sm:$0xff] %vm446, 0.0
        %465 = vst.msk [vmem:[#allocation2 + $0x18] sm:$0xff] %vm446, 0.0
        %466 = vst.msk [vmem:[#allocation2 + $0x38] sm:$0xff] %vm446, 0.0
        %467 = vst.msk [vmem:[#allocation2 + $0x58] sm:$0xff] %vm446, 0.0
        %468 = vst.msk [vmem:[#allocation2 + $0x78] sm:$0xff] %vm446, 0.0
        %469 = vst.msk [vmem:[#allocation2 + $0x98] sm:$0xff] %vm446, 0.0
        %470 = vst.msk [vmem:[#allocation2 + $0xb8] sm:$0xff] %vm446, 0.0
        %471 = vst.msk [vmem:[#allocation2 + $0xd8] sm:$0xff] %vm446, 0.0
        %472 = vst.msk [vmem:[#allocation2 + $0xf8] sm:$0xff] %vm446, 0.0
        %473 = vst.msk [vmem:[#allocation2 + $0x118] sm:$0xff] %vm446, 0.0
        %474 = vst.msk [vmem:[#allocation2 + $0x138] sm:$0xff] %vm446, 0.0
        %475 = vst.msk [vmem:[#allocation2 + $0x158] sm:$0xff] %vm446, 0.0
        %476 = vst.msk [vmem:[#allocation2 + $0x178] sm:$0xff] %vm446, 0.0
        %477 = vst.msk [vmem:[#allocation2 + $0x198] sm:$0xff] %vm446, 0.0
        %478 = vst.msk [vmem:[#allocation2 + $0x1b8] sm:$0xff] %vm446, 0.0
        %479 = vst.msk [vmem:[#allocation2 + $0x1d8] sm:$0xff] %vm446, 0.0
        %480 = vst.msk [vmem:[#allocation2 + $0x1f8] sm:$0xff] %vm446, 0.0
        %481 = vst.msk [vmem:[#allocation2 + $0x218] sm:$0xff] %vm446, 0.0
        %482 = vst.msk [vmem:[#allocation2 + $0x238] sm:$0xff] %vm446, 0.0
        %v483 = vld [vmem:[%s371] sm:$0xff]
        %v484 = vld [vmem:[%s371 + $0x8] sm:$0xff]
        %p485 = scmp.gt.s32.totalorder %s32, 0
        %s486 = scalar_select %p485, 1, 0
        %v487 = vstv %s486
        %vm488 = vcmp.eq.s32.totalorder %v487, 1
        %v489 = vsel %vm488, %v483, 0.0
        %v490 = vsel %vm488, %v484, 0.0
        %491 = vst.msk [vmem:[#allocation2 + $0x8] sm:$0xff] %vm446, %v489
        %492 = vst.msk [vmem:[#allocation2 + $0x10] sm:$0xff] %vm446, %v490
        %v493 = vld [vmem:[%s380] sm:$0xff]
        %v494 = vld [vmem:[%s380 + $0x8] sm:$0xff]
        %p495 = scmp.lt.s32.totalorder %s32, 0
        %s496 = scalar_select %p495, 1, 0
        %v497 = vstv %s496
        %vm498 = vcmp.eq.s32.totalorder %v497, 1
        %v499 = vsel %vm498, %v493, 0.0
        %v500 = vsel %vm498, %v494, 0.0
        %s501 = scalar_lea.vmem [#allocation2], 544
        %502 = vst.msk [vmem:[%s501 + $0x8] sm:$0xff] %vm446, %v499
        %503 = vst.msk [vmem:[%s501 + $0x10] sm:$0xff] %vm446, %v500
        %v504 = vld [vmem:[%s362] sm:$0xff]
        %v505 = vld [vmem:[%s362 + $0x8] sm:$0xff]
        %v506 = vld [vmem:[%s362 + $0x10] sm:$0xff]
        %v507 = vld [vmem:[%s362 + $0x18] sm:$0xff]
        %v508 = vld [vmem:[%s362 + $0x20] sm:$0xff]
        %v509 = vld [vmem:[%s362 + $0x28] sm:$0xff]
        %v510 = vld [vmem:[%s362 + $0x30] sm:$0xff]
        %v511 = vld [vmem:[%s362 + $0x38] sm:$0xff]
        %v512 = vld [vmem:[%s362 + $0x40] sm:$0xff]
        %v513 = vld [vmem:[%s362 + $0x48] sm:$0xff]
        %v514 = vld [vmem:[%s362 + $0x50] sm:$0xff]
        %v515 = vld [vmem:[%s362 + $0x58] sm:$0xff]
        %v516 = vld [vmem:[%s362 + $0x60] sm:$0xff]
        %v517 = vld [vmem:[%s362 + $0x68] sm:$0xff]
        %v518 = vld [vmem:[%s362 + $0x70] sm:$0xff]
        %v519 = vld [vmem:[%s362 + $0x78] sm:$0xff]
        %v520 = vld [vmem:[%s362 + $0x80] sm:$0xff]
        %v521 = vld [vmem:[%s362 + $0x88] sm:$0xff]
        %v522 = vld [vmem:[%s362 + $0x90] sm:$0xff]
        %v523 = vld [vmem:[%s362 + $0x98] sm:$0xff]
        %v524 = vld [vmem:[%s362 + $0xa0] sm:$0xff]
        %v525 = vld [vmem:[%s362 + $0xa8] sm:$0xff]
        %v526 = vld [vmem:[%s362 + $0xb0] sm:$0xff]
        %v527 = vld [vmem:[%s362 + $0xb8] sm:$0xff]
        %v528 = vld [vmem:[%s362 + $0xc0] sm:$0xff]
        %v529 = vld [vmem:[%s362 + $0xc8] sm:$0xff]
        %v530 = vld [vmem:[%s362 + $0xd0] sm:$0xff]
        %v531 = vld [vmem:[%s362 + $0xd8] sm:$0xff]
        %v532 = vld [vmem:[%s362 + $0xe0] sm:$0xff]
        %v533 = vld [vmem:[%s362 + $0xe8] sm:$0xff]
        %v534 = vld [vmem:[%s362 + $0xf0] sm:$0xff]
        %v535 = vld [vmem:[%s362 + $0xf8] sm:$0xff]
        %s536 = scalar_lea.vmem [#allocation2], 32
        %537 = vst.msk [vmem:[%s536 + $0x8] sm:$0xff] %vm446, %v504
        %538 = vst.msk [vmem:[%s536 + $0x10] sm:$0xff] %vm446, %v505
        %539 = vst.msk [vmem:[%s536 + $0x28] sm:$0xff] %vm446, %v506
        %540 = vst.msk [vmem:[%s536 + $0x30] sm:$0xff] %vm446, %v507
        %541 = vst.msk [vmem:[%s536 + $0x48] sm:$0xff] %vm446, %v508
        %542 = vst.msk [vmem:[%s536 + $0x50] sm:$0xff] %vm446, %v509
        %543 = vst.msk [vmem:[%s536 + $0x68] sm:$0xff] %vm446, %v510
        %544 = vst.msk [vmem:[%s536 + $0x70] sm:$0xff] %vm446, %v511
        %545 = vst.msk [vmem:[%s536 + $0x88] sm:$0xff] %vm446, %v512
        %546 = vst.msk [vmem:[%s536 + $0x90] sm:$0xff] %vm446, %v513
        %547 = vst.msk [vmem:[%s536 + $0xa8] sm:$0xff] %vm446, %v514
        %548 = vst.msk [vmem:[%s536 + $0xb0] sm:$0xff] %vm446, %v515
        %549 = vst.msk [vmem:[%s536 + $0xc8] sm:$0xff] %vm446, %v516
        %550 = vst.msk [vmem:[%s536 + $0xd0] sm:$0xff] %vm446, %v517
        %551 = vst.msk [vmem:[%s536 + $0xe8] sm:$0xff] %vm446, %v518
        %552 = vst.msk [vmem:[%s536 + $0xf0] sm:$0xff] %vm446, %v519
        %553 = vst.msk [vmem:[%s536 + $0x108] sm:$0xff] %vm446, %v520
        %554 = vst.msk [vmem:[%s536 + $0x110] sm:$0xff] %vm446, %v521
        %555 = vst.msk [vmem:[%s536 + $0x128] sm:$0xff] %vm446, %v522
        %556 = vst.msk [vmem:[%s536 + $0x130] sm:$0xff] %vm446, %v523
        %557 = vst.msk [vmem:[%s536 + $0x148] sm:$0xff] %vm446, %v524
        %558 = vst.msk [vmem:[%s536 + $0x150] sm:$0xff] %vm446, %v525
        %559 = vst.msk [vmem:[%s536 + $0x168] sm:$0xff] %vm446, %v526
        %560 = vst.msk [vmem:[%s536 + $0x170] sm:$0xff] %vm446, %v527
        %561 = vst.msk [vmem:[%s536 + $0x188] sm:$0xff] %vm446, %v528
        %562 = vst.msk [vmem:[%s536 + $0x190] sm:$0xff] %vm446, %v529
        %563 = vst.msk [vmem:[%s536 + $0x1a8] sm:$0xff] %vm446, %v530
        %564 = vst.msk [vmem:[%s536 + $0x1b0] sm:$0xff] %vm446, %v531
        %565 = vst.msk [vmem:[%s536 + $0x1c8] sm:$0xff] %vm446, %v532
        %566 = vst.msk [vmem:[%s536 + $0x1d0] sm:$0xff] %vm446, %v533
        %567 = vst.msk [vmem:[%s536 + $0x1e8] sm:$0xff] %vm446, %v534
        %568 = vst.msk [vmem:[%s536 + $0x1f0] sm:$0xff] %vm446, %v535
        %v569 = vld [vmem:[#allocation2 + $0x7] sm:$0xff]
        %v570 = vld [vmem:[#allocation2 + $0xf] sm:$0xff]
        %v571 = vld [vmem:[#allocation2 + $0x27] sm:$0xff]
        %v572 = vld [vmem:[#allocation2 + $0x2f] sm:$0xff]
        %v573 = vld [vmem:[#allocation2 + $0x47] sm:$0xff]
        %v574 = vld [vmem:[#allocation2 + $0x4f] sm:$0xff]
        %v575 = vld [vmem:[#allocation2 + $0x67] sm:$0xff]
        %v576 = vld [vmem:[#allocation2 + $0x6f] sm:$0xff]
        %v577 = vld [vmem:[#allocation2 + $0x87] sm:$0xff]
        %v578 = vld [vmem:[#allocation2 + $0x8f] sm:$0xff]
        %v579 = vld [vmem:[#allocation2 + $0xa7] sm:$0xff]
        %v580 = vld [vmem:[#allocation2 + $0xaf] sm:$0xff]
        %v581 = vld [vmem:[#allocation2 + $0xc7] sm:$0xff]
        %v582 = vld [vmem:[#allocation2 + $0xcf] sm:$0xff]
        %v583 = vld [vmem:[#allocation2 + $0xe7] sm:$0xff]
        %v584 = vld [vmem:[#allocation2 + $0xef] sm:$0xff]
        %v585 = vld [vmem:[#allocation2 + $0x107] sm:$0xff]
        %v586 = vld [vmem:[#allocation2 + $0x10f] sm:$0xff]
        %v587 = vld [vmem:[#allocation2 + $0x127] sm:$0xff]
        %v588 = vld [vmem:[#allocation2 + $0x12f] sm:$0xff]
        %v589 = vld [vmem:[#allocation2 + $0x147] sm:$0xff]
        %v590 = vld [vmem:[#allocation2 + $0x14f] sm:$0xff]
        %v591 = vld [vmem:[#allocation2 + $0x167] sm:$0xff]
        %v592 = vld [vmem:[#allocation2 + $0x16f] sm:$0xff]
        %v593 = vld [vmem:[#allocation2 + $0x187] sm:$0xff]
        %v594 = vld [vmem:[#allocation2 + $0x18f] sm:$0xff]
        %v595 = vld [vmem:[#allocation2 + $0x1a7] sm:$0xff]
        %v596 = vld [vmem:[#allocation2 + $0x1af] sm:$0xff]
        %v597 = vld [vmem:[#allocation2 + $0x1c7] sm:$0xff]
        %v598 = vld [vmem:[#allocation2 + $0x1cf] sm:$0xff]
        %v599 = vld [vmem:[#allocation2 + $0x1e7] sm:$0xff]
        %v600 = vld [vmem:[#allocation2 + $0x1ef] sm:$0xff]
        %v601 = vld [vmem:[#allocation2 + $0x207] sm:$0xff]
        %v602 = vld [vmem:[#allocation2 + $0x20f] sm:$0xff]
        %v603 = vld [vmem:[#allocation2 + $0x227] sm:$0xff]
        %v604 = vld [vmem:[#allocation2 + $0x22f] sm:$0xff]
        %v605 = vlaneseq
        %v606 = vshrl.u32 %v605, 7
        %v607 = vsub.s32 0, %v606
        %v608 = vrot.slane %v438, %v607
        %v609 = vmul.f32 %v569, %v608
        %v610 = vmul.f32 %v570, %v608
        %v611 = vmul.f32 %v571, %v608
        %v612 = vmul.f32 %v572, %v608
        %v613 = vmul.f32 %v573, %v608
        %v614 = vmul.f32 %v574, %v608
        %v615 = vmul.f32 %v575, %v608
        %v616 = vmul.f32 %v576, %v608
        %v617 = vmul.f32 %v577, %v608
        %v618 = vmul.f32 %v578, %v608
        %v619 = vmul.f32 %v579, %v608
        %v620 = vmul.f32 %v580, %v608
        %v621 = vmul.f32 %v581, %v608
        %v622 = vmul.f32 %v582, %v608
        %v623 = vmul.f32 %v583, %v608
        %v624 = vmul.f32 %v584, %v608
        %v625 = vmul.f32 %v585, %v608
        %v626 = vmul.f32 %v586, %v608
        %v627 = vmul.f32 %v587, %v608
        %v628 = vmul.f32 %v588, %v608
        %v629 = vmul.f32 %v589, %v608
        %v630 = vmul.f32 %v590, %v608
        %v631 = vmul.f32 %v591, %v608
        %v632 = vmul.f32 %v592, %v608
        %v633 = vmul.f32 %v593, %v608
        %v634 = vmul.f32 %v594, %v608
        %v635 = vmul.f32 %v595, %v608
        %v636 = vmul.f32 %v596, %v608
        %v637 = vmul.f32 %v597, %v608
        %v638 = vmul.f32 %v598, %v608
        %v639 = vmul.f32 %v599, %v608
        %v640 = vmul.f32 %v600, %v608
        %v641 = vadd.f32 %v609, 0.0
        %v642 = vadd.f32 %v610, 0.0
        %v643 = vadd.f32 %v611, 0.0
        %v644 = vadd.f32 %v612, 0.0
        %v645 = vadd.f32 %v613, 0.0
        %v646 = vadd.f32 %v614, 0.0
        %v647 = vadd.f32 %v615, 0.0
        %v648 = vadd.f32 %v616, 0.0
        %v649 = vadd.f32 %v617, 0.0
        %v650 = vadd.f32 %v618, 0.0
        %v651 = vadd.f32 %v619, 0.0
        %v652 = vadd.f32 %v620, 0.0
        %v653 = vadd.f32 %v621, 0.0
        %v654 = vadd.f32 %v622, 0.0
        %v655 = vadd.f32 %v623, 0.0
        %v656 = vadd.f32 %v624, 0.0
        %v657 = vadd.f32 %v625, 0.0
        %v658 = vadd.f32 %v626, 0.0
        %v659 = vadd.f32 %v627, 0.0
        %v660 = vadd.f32 %v628, 0.0
        %v661 = vadd.f32 %v629, 0.0
        %v662 = vadd.f32 %v630, 0.0
        %v663 = vadd.f32 %v631, 0.0
        %v664 = vadd.f32 %v632, 0.0
        %v665 = vadd.f32 %v633, 0.0
        %v666 = vadd.f32 %v634, 0.0
        %v667 = vadd.f32 %v635, 0.0
        %v668 = vadd.f32 %v636, 0.0
        %v669 = vadd.f32 %v637, 0.0
        %v670 = vadd.f32 %v638, 0.0
        %v671 = vadd.f32 %v639, 0.0
        %v672 = vadd.f32 %v640, 0.0
        %v673 = vlaneseq
        %v674 = vshrl.u32 %v673, 7
        %v675 = vsub.s32 0, %v674
        %v676 = vrot.slane %v439, %v675
        %v677 = vmul.f32 %v571, %v676
        %v678 = vmul.f32 %v572, %v676
        %v679 = vmul.f32 %v573, %v676
        %v680 = vmul.f32 %v574, %v676
        %v681 = vmul.f32 %v575, %v676
        %v682 = vmul.f32 %v576, %v676
        %v683 = vmul.f32 %v577, %v676
        %v684 = vmul.f32 %v578, %v676
        %v685 = vmul.f32 %v579, %v676
        %v686 = vmul.f32 %v580, %v676
        %v687 = vmul.f32 %v581, %v676
        %v688 = vmul.f32 %v582, %v676
        %v689 = vmul.f32 %v583, %v676
        %v690 = vmul.f32 %v584, %v676
        %v691 = vmul.f32 %v585, %v676
        %v692 = vmul.f32 %v586, %v676
        %v693 = vmul.f32 %v587, %v676
        %v694 = vmul.f32 %v588, %v676
        %v695 = vmul.f32 %v589, %v676
        %v696 = vmul.f32 %v590, %v676
        %v697 = vmul.f32 %v591, %v676
        %v698 = vmul.f32 %v592, %v676
        %v699 = vmul.f32 %v593, %v676
        %v700 = vmul.f32 %v594, %v676
        %v701 = vmul.f32 %v595, %v676
        %v702 = vmul.f32 %v596, %v676
        %v703 = vmul.f32 %v597, %v676
        %v704 = vmul.f32 %v598, %v676
        %v705 = vmul.f32 %v599, %v676
        %v706 = vmul.f32 %v600, %v676
        %v707 = vmul.f32 %v601, %v676
        %v708 = vmul.f32 %v602, %v676
        %v709 = vadd.f32 %v641, %v677
        %v710 = vadd.f32 %v642, %v678
        %v711 = vadd.f32 %v643, %v679
        %v712 = vadd.f32 %v644, %v680
        %v713 = vadd.f32 %v645, %v681
        %v714 = vadd.f32 %v646, %v682
        %v715 = vadd.f32 %v647, %v683
        %v716 = vadd.f32 %v648, %v684
        %v717 = vadd.f32 %v649, %v685
        %v718 = vadd.f32 %v650, %v686
        %v719 = vadd.f32 %v651, %v687
        %v720 = vadd.f32 %v652, %v688
        %v721 = vadd.f32 %v653, %v689
        %v722 = vadd.f32 %v654, %v690
        %v723 = vadd.f32 %v655, %v691
        %v724 = vadd.f32 %v656, %v692
        %v725 = vadd.f32 %v657, %v693
        %v726 = vadd.f32 %v658, %v694
        %v727 = vadd.f32 %v659, %v695
        %v728 = vadd.f32 %v660, %v696
        %v729 = vadd.f32 %v661, %v697
        %v730 = vadd.f32 %v662, %v698
        %v731 = vadd.f32 %v663, %v699
        %v732 = vadd.f32 %v664, %v700
        %v733 = vadd.f32 %v665, %v701
        %v734 = vadd.f32 %v666, %v702
        %v735 = vadd.f32 %v667, %v703
        %v736 = vadd.f32 %v668, %v704
        %v737 = vadd.f32 %v669, %v705
        %v738 = vadd.f32 %v670, %v706
        %v739 = vadd.f32 %v671, %v707
        %v740 = vadd.f32 %v672, %v708
        %v741 = vlaneseq
        %v742 = vshrl.u32 %v741, 7
        %v743 = vsub.s32 0, %v742
        %v744 = vrot.slane %v440, %v743
        %v745 = vmul.f32 %v573, %v744
        %v746 = vmul.f32 %v574, %v744
        %v747 = vmul.f32 %v575, %v744
        %v748 = vmul.f32 %v576, %v744
        %v749 = vmul.f32 %v577, %v744
        %v750 = vmul.f32 %v578, %v744
        %v751 = vmul.f32 %v579, %v744
        %v752 = vmul.f32 %v580, %v744
        %v753 = vmul.f32 %v581, %v744
        %v754 = vmul.f32 %v582, %v744
        %v755 = vmul.f32 %v583, %v744
        %v756 = vmul.f32 %v584, %v744
        %v757 = vmul.f32 %v585, %v744
        %v758 = vmul.f32 %v586, %v744
        %v759 = vmul.f32 %v587, %v744
        %v760 = vmul.f32 %v588, %v744
        %v761 = vmul.f32 %v589, %v744
        %v762 = vmul.f32 %v590, %v744
        %v763 = vmul.f32 %v591, %v744
        %v764 = vmul.f32 %v592, %v744
        %v765 = vmul.f32 %v593, %v744
        %v766 = vmul.f32 %v594, %v744
        %v767 = vmul.f32 %v595, %v744
        %v768 = vmul.f32 %v596, %v744
        %v769 = vmul.f32 %v597, %v744
        %v770 = vmul.f32 %v598, %v744
        %v771 = vmul.f32 %v599, %v744
        %v772 = vmul.f32 %v600, %v744
        %v773 = vmul.f32 %v601, %v744
        %v774 = vmul.f32 %v602, %v744
        %v775 = vmul.f32 %v603, %v744
        %v776 = vmul.f32 %v604, %v744
        %v777 = vadd.f32 %v709, %v745
        %v778 = vadd.f32 %v710, %v746
        %v779 = vadd.f32 %v711, %v747
        %v780 = vadd.f32 %v712, %v748
        %v781 = vadd.f32 %v713, %v749
        %v782 = vadd.f32 %v714, %v750
        %v783 = vadd.f32 %v715, %v751
        %v784 = vadd.f32 %v716, %v752
        %v785 = vadd.f32 %v717, %v753
        %v786 = vadd.f32 %v718, %v754
        %v787 = vadd.f32 %v719, %v755
        %v788 = vadd.f32 %v720, %v756
        %v789 = vadd.f32 %v721, %v757
        %v790 = vadd.f32 %v722, %v758
        %v791 = vadd.f32 %v723, %v759
        %v792 = vadd.f32 %v724, %v760
        %v793 = vadd.f32 %v725, %v761
        %v794 = vadd.f32 %v726, %v762
        %v795 = vadd.f32 %v727, %v763
        %v796 = vadd.f32 %v728, %v764
        %v797 = vadd.f32 %v729, %v765
        %v798 = vadd.f32 %v730, %v766
        %v799 = vadd.f32 %v731, %v767
        %v800 = vadd.f32 %v732, %v768
        %v801 = vadd.f32 %v733, %v769
        %v802 = vadd.f32 %v734, %v770
        %v803 = vadd.f32 %v735, %v771
        %v804 = vadd.f32 %v736, %v772
        %v805 = vadd.f32 %v737, %v773
        %v806 = vadd.f32 %v738, %v774
        %v807 = vadd.f32 %v739, %v775
        %v808 = vadd.f32 %v740, %v776
        %v809 = vld [vmem:[#allocation2 + $0x8] sm:$0xff]
        %v810 = vld [vmem:[#allocation2 + $0x10] sm:$0xff]
        %v811 = vld [vmem:[#allocation2 + $0x28] sm:$0xff]
        %v812 = vld [vmem:[#allocation2 + $0x30] sm:$0xff]
        %v813 = vld [vmem:[#allocation2 + $0x48] sm:$0xff]
        %v814 = vld [vmem:[#allocation2 + $0x50] sm:$0xff]
        %v815 = vld [vmem:[#allocation2 + $0x68] sm:$0xff]
        %v816 = vld [vmem:[#allocation2 + $0x70] sm:$0xff]
        %v817 = vld [vmem:[#allocation2 + $0x88] sm:$0xff]
        %v818 = vld [vmem:[#allocation2 + $0x90] sm:$0xff]
        %v819 = vld [vmem:[#allocation2 + $0xa8] sm:$0xff]
        %v820 = vld [vmem:[#allocation2 + $0xb0] sm:$0xff]
        %v821 = vld [vmem:[#allocation2 + $0xc8] sm:$0xff]
        %v822 = vld [vmem:[#allocation2 + $0xd0] sm:$0xff]
        %v823 = vld [vmem:[#allocation2 + $0xe8] sm:$0xff]
        %v824 = vld [vmem:[#allocation2 + $0xf0] sm:$0xff]
        %v825 = vld [vmem:[#allocation2 + $0x108] sm:$0xff]
        %v826 = vld [vmem:[#allocation2 + $0x110] sm:$0xff]
        %v827 = vld [vmem:[#allocation2 + $0x128] sm:$0xff]
        %v828 = vld [vmem:[#allocation2 + $0x130] sm:$0xff]
        %v829 = vld [vmem:[#allocation2 + $0x148] sm:$0xff]
        %v830 = vld [vmem:[#allocation2 + $0x150] sm:$0xff]
        %v831 = vld [vmem:[#allocation2 + $0x168] sm:$0xff]
        %v832 = vld [vmem:[#allocation2 + $0x170] sm:$0xff]
        %v833 = vld [vmem:[#allocation2 + $0x188] sm:$0xff]
        %v834 = vld [vmem:[#allocation2 + $0x190] sm:$0xff]
        %v835 = vld [vmem:[#allocation2 + $0x1a8] sm:$0xff]
        %v836 = vld [vmem:[#allocation2 + $0x1b0] sm:$0xff]
        %v837 = vld [vmem:[#allocation2 + $0x1c8] sm:$0xff]
        %v838 = vld [vmem:[#allocation2 + $0x1d0] sm:$0xff]
        %v839 = vld [vmem:[#allocation2 + $0x1e8] sm:$0xff]
        %v840 = vld [vmem:[#allocation2 + $0x1f0] sm:$0xff]
        %v841 = vld [vmem:[#allocation2 + $0x208] sm:$0xff]
        %v842 = vld [vmem:[#allocation2 + $0x210] sm:$0xff]
        %v843 = vld [vmem:[#allocation2 + $0x228] sm:$0xff]
        %v844 = vld [vmem:[#allocation2 + $0x230] sm:$0xff]
        %v845 = vlaneseq
        %v846 = vshrl.u32 %v845, 7
        %v847 = vsub.s32 1, %v846
        %v848 = vrot.slane %v438, %v847
        %v849 = vmul.f32 %v809, %v848
        %v850 = vmul.f32 %v810, %v848
        %v851 = vmul.f32 %v811, %v848
        %v852 = vmul.f32 %v812, %v848
        %v853 = vmul.f32 %v813, %v848
        %v854 = vmul.f32 %v814, %v848
        %v855 = vmul.f32 %v815, %v848
        %v856 = vmul.f32 %v816, %v848
        %v857 = vmul.f32 %v817, %v848
        %v858 = vmul.f32 %v818, %v848
        %v859 = vmul.f32 %v819, %v848
        %v860 = vmul.f32 %v820, %v848
        %v861 = vmul.f32 %v821, %v848
        %v862 = vmul.f32 %v822, %v848
        %v863 = vmul.f32 %v823, %v848
        %v864 = vmul.f32 %v824, %v848
        %v865 = vmul.f32 %v825, %v848
        %v866 = vmul.f32 %v826, %v848
        %v867 = vmul.f32 %v827, %v848
        %v868 = vmul.f32 %v828, %v848
        %v869 = vmul.f32 %v829, %v848
        %v870 = vmul.f32 %v830, %v848
        %v871 = vmul.f32 %v831, %v848
        %v872 = vmul.f32 %v832, %v848
        %v873 = vmul.f32 %v833, %v848
        %v874 = vmul.f32 %v834, %v848
        %v875 = vmul.f32 %v835, %v848
        %v876 = vmul.f32 %v836, %v848
        %v877 = vmul.f32 %v837, %v848
        %v878 = vmul.f32 %v838, %v848
        %v879 = vmul.f32 %v839, %v848
        %v880 = vmul.f32 %v840, %v848
        %v881 = vadd.f32 %v777, %v849
        %v882 = vadd.f32 %v778, %v850
        %v883 = vadd.f32 %v779, %v851
        %v884 = vadd.f32 %v780, %v852
        %v885 = vadd.f32 %v781, %v853
        %v886 = vadd.f32 %v782, %v854
        %v887 = vadd.f32 %v783, %v855
        %v888 = vadd.f32 %v784, %v856
        %v889 = vadd.f32 %v785, %v857
        %v890 = vadd.f32 %v786, %v858
        %v891 = vadd.f32 %v787, %v859
        %v892 = vadd.f32 %v788, %v860
        %v893 = vadd.f32 %v789, %v861
        %v894 = vadd.f32 %v790, %v862
        %v895 = vadd.f32 %v791, %v863
        %v896 = vadd.f32 %v792, %v864
        %v897 = vadd.f32 %v793, %v865
        %v898 = vadd.f32 %v794, %v866
        %v899 = vadd.f32 %v795, %v867
        %v900 = vadd.f32 %v796, %v868
        %v901 = vadd.f32 %v797, %v869
        %v902 = vadd.f32 %v798, %v870
        %v903 = vadd.f32 %v799, %v871
        %v904 = vadd.f32 %v800, %v872
        %v905 = vadd.f32 %v801, %v873
        %v906 = vadd.f32 %v802, %v874
        %v907 = vadd.f32 %v803, %v875
        %v908 = vadd.f32 %v804, %v876
        %v909 = vadd.f32 %v805, %v877
        %v910 = vadd.f32 %v806, %v878
        %v911 = vadd.f32 %v807, %v879
        %v912 = vadd.f32 %v808, %v880
        %v913 = vlaneseq
        %v914 = vshrl.u32 %v913, 7
        %v915 = vsub.s32 1, %v914
        %v916 = vrot.slane %v439, %v915
        %v917 = vmul.f32 %v811, %v916
        %v918 = vmul.f32 %v812, %v916
        %v919 = vmul.f32 %v813, %v916
        %v920 = vmul.f32 %v814, %v916
        %v921 = vmul.f32 %v815, %v916
        %v922 = vmul.f32 %v816, %v916
        %v923 = vmul.f32 %v817, %v916
        %v924 = vmul.f32 %v818, %v916
        %v925 = vmul.f32 %v819, %v916
        %v926 = vmul.f32 %v820, %v916
        %v927 = vmul.f32 %v821, %v916
        %v928 = vmul.f32 %v822, %v916
        %v929 = vmul.f32 %v823, %v916
        %v930 = vmul.f32 %v824, %v916
        %v931 = vmul.f32 %v825, %v916
        %v932 = vmul.f32 %v826, %v916
        %v933 = vmul.f32 %v827, %v916
        %v934 = vmul.f32 %v828, %v916
        %v935 = vmul.f32 %v829, %v916
        %v936 = vmul.f32 %v830, %v916
        %v937 = vmul.f32 %v831, %v916
        %v938 = vmul.f32 %v832, %v916
        %v939 = vmul.f32 %v833, %v916
        %v940 = vmul.f32 %v834, %v916
        %v941 = vmul.f32 %v835, %v916
        %v942 = vmul.f32 %v836, %v916
        %v943 = vmul.f32 %v837, %v916
        %v944 = vmul.f32 %v838, %v916
        %v945 = vmul.f32 %v839, %v916
        %v946 = vmul.f32 %v840, %v916
        %v947 = vmul.f32 %v841, %v916
        %v948 = vmul.f32 %v842, %v916
        %v949 = vadd.f32 %v881, %v917
        %v950 = vadd.f32 %v882, %v918
        %v951 = vadd.f32 %v883, %v919
        %v952 = vadd.f32 %v884, %v920
        %v953 = vadd.f32 %v885, %v921
        %v954 = vadd.f32 %v886, %v922
        %v955 = vadd.f32 %v887, %v923
        %v956 = vadd.f32 %v888, %v924
        %v957 = vadd.f32 %v889, %v925
        %v958 = vadd.f32 %v890, %v926
        %v959 = vadd.f32 %v891, %v927
        %v960 = vadd.f32 %v892, %v928
        %v961 = vadd.f32 %v893, %v929
        %v962 = vadd.f32 %v894, %v930
        %v963 = vadd.f32 %v895, %v931
        %v964 = vadd.f32 %v896, %v932
        %v965 = vadd.f32 %v897, %v933
        %v966 = vadd.f32 %v898, %v934
        %v967 = vadd.f32 %v899, %v935
        %v968 = vadd.f32 %v900, %v936
        %v969 = vadd.f32 %v901, %v937
        %v970 = vadd.f32 %v902, %v938
        %v971 = vadd.f32 %v903, %v939
        %v972 = vadd.f32 %v904, %v940
        %v973 = vadd.f32 %v905, %v941
        %v974 = vadd.f32 %v906, %v942
        %v975 = vadd.f32 %v907, %v943
        %v976 = vadd.f32 %v908, %v944
        %v977 = vadd.f32 %v909, %v945
        %v978 = vadd.f32 %v910, %v946
        %v979 = vadd.f32 %v911, %v947
        %v980 = vadd.f32 %v912, %v948
        %v981 = vlaneseq
        %v982 = vshrl.u32 %v981, 7
        %v983 = vsub.s32 1, %v982
        %v984 = vrot.slane %v440, %v983
        %v985 = vmul.f32 %v813, %v984
        %v986 = vmul.f32 %v814, %v984
        %v987 = vmul.f32 %v815, %v984
        %v988 = vmul.f32 %v816, %v984
        %v989 = vmul.f32 %v817, %v984
        %v990 = vmul.f32 %v818, %v984
        %v991 = vmul.f32 %v819, %v984
        %v992 = vmul.f32 %v820, %v984
        %v993 = vmul.f32 %v821, %v984
        %v994 = vmul.f32 %v822, %v984
        %v995 = vmul.f32 %v823, %v984
        %v996 = vmul.f32 %v824, %v984
        %v997 = vmul.f32 %v825, %v984
        %v998 = vmul.f32 %v826, %v984
        %v999 = vmul.f32 %v827, %v984
        %v1000 = vmul.f32 %v828, %v984
        %v1001 = vmul.f32 %v829, %v984
        %v1002 = vmul.f32 %v830, %v984
        %v1003 = vmul.f32 %v831, %v984
        %v1004 = vmul.f32 %v832, %v984
        %v1005 = vmul.f32 %v833, %v984
        %v1006 = vmul.f32 %v834, %v984
        %v1007 = vmul.f32 %v835, %v984
        %v1008 = vmul.f32 %v836, %v984
        %v1009 = vmul.f32 %v837, %v984
        %v1010 = vmul.f32 %v838, %v984
        %v1011 = vmul.f32 %v839, %v984
        %v1012 = vmul.f32 %v840, %v984
        %v1013 = vmul.f32 %v841, %v984
        %v1014 = vmul.f32 %v842, %v984
        %v1015 = vmul.f32 %v843, %v984
        %v1016 = vmul.f32 %v844, %v984
        %v1017 = vadd.f32 %v949, %v985
        %v1018 = vadd.f32 %v950, %v986
        %v1019 = vadd.f32 %v951, %v987
        %v1020 = vadd.f32 %v952, %v988
        %v1021 = vadd.f32 %v953, %v989
        %v1022 = vadd.f32 %v954, %v990
        %v1023 = vadd.f32 %v955, %v991
        %v1024 = vadd.f32 %v956, %v992
        %v1025 = vadd.f32 %v957, %v993
        %v1026 = vadd.f32 %v958, %v994
        %v1027 = vadd.f32 %v959, %v995
        %v1028 = vadd.f32 %v960, %v996
        %v1029 = vadd.f32 %v961, %v997
        %v1030 = vadd.f32 %v962, %v998
        %v1031 = vadd.f32 %v963, %v999
        %v1032 = vadd.f32 %v964, %v1000
        %v1033 = vadd.f32 %v965, %v1001
        %v1034 = vadd.f32 %v966, %v1002
        %v1035 = vadd.f32 %v967, %v1003
        %v1036 = vadd.f32 %v968, %v1004
        %v1037 = vadd.f32 %v969, %v1005
        %v1038 = vadd.f32 %v970, %v1006
        %v1039 = vadd.f32 %v971, %v1007
        %v1040 = vadd.f32 %v972, %v1008
        %v1041 = vadd.f32 %v973, %v1009
        %v1042 = vadd.f32 %v974, %v1010
        %v1043 = vadd.f32 %v975, %v1011
        %v1044 = vadd.f32 %v976, %v1012
        %v1045 = vadd.f32 %v977, %v1013
        %v1046 = vadd.f32 %v978, %v1014
        %v1047 = vadd.f32 %v979, %v1015
        %v1048 = vadd.f32 %v980, %v1016
        %v1049 = vld [vmem:[#allocation2 + $0x9] sm:$0xff]
        %v1050 = vld [vmem:[#allocation2 + $0x11] sm:$0xff]
        %v1051 = vld [vmem:[#allocation2 + $0x29] sm:$0xff]
        %v1052 = vld [vmem:[#allocation2 + $0x31] sm:$0xff]
        %v1053 = vld [vmem:[#allocation2 + $0x49] sm:$0xff]
        %v1054 = vld [vmem:[#allocation2 + $0x51] sm:$0xff]
        %v1055 = vld [vmem:[#allocation2 + $0x69] sm:$0xff]
        %v1056 = vld [vmem:[#allocation2 + $0x71] sm:$0xff]
        %v1057 = vld [vmem:[#allocation2 + $0x89] sm:$0xff]
        %v1058 = vld [vmem:[#allocation2 + $0x91] sm:$0xff]
        %v1059 = vld [vmem:[#allocation2 + $0xa9] sm:$0xff]
        %v1060 = vld [vmem:[#allocation2 + $0xb1] sm:$0xff]
        %v1061 = vld [vmem:[#allocation2 + $0xc9] sm:$0xff]
        %v1062 = vld [vmem:[#allocation2 + $0xd1] sm:$0xff]
        %v1063 = vld [vmem:[#allocation2 + $0xe9] sm:$0xff]
        %v1064 = vld [vmem:[#allocation2 + $0xf1] sm:$0xff]
        %v1065 = vld [vmem:[#allocation2 + $0x109] sm:$0xff]
        %v1066 = vld [vmem:[#allocation2 + $0x111] sm:$0xff]
        %v1067 = vld [vmem:[#allocation2 + $0x129] sm:$0xff]
        %v1068 = vld [vmem:[#allocation2 + $0x131] sm:$0xff]
        %v1069 = vld [vmem:[#allocation2 + $0x149] sm:$0xff]
        %v1070 = vld [vmem:[#allocation2 + $0x151] sm:$0xff]
        %v1071 = vld [vmem:[#allocation2 + $0x169] sm:$0xff]
        %v1072 = vld [vmem:[#allocation2 + $0x171] sm:$0xff]
        %v1073 = vld [vmem:[#allocation2 + $0x189] sm:$0xff]
        %v1074 = vld [vmem:[#allocation2 + $0x191] sm:$0xff]
        %v1075 = vld [vmem:[#allocation2 + $0x1a9] sm:$0xff]
        %v1076 = vld [vmem:[#allocation2 + $0x1b1] sm:$0xff]
        %v1077 = vld [vmem:[#allocation2 + $0x1c9] sm:$0xff]
        %v1078 = vld [vmem:[#allocation2 + $0x1d1] sm:$0xff]
        %v1079 = vld [vmem:[#allocation2 + $0x1e9] sm:$0xff]
        %v1080 = vld [vmem:[#allocation2 + $0x1f1] sm:$0xff]
        %v1081 = vld [vmem:[#allocation2 + $0x209] sm:$0xff]
        %v1082 = vld [vmem:[#allocation2 + $0x211] sm:$0xff]
        %v1083 = vld [vmem:[#allocation2 + $0x229] sm:$0xff]
        %v1084 = vld [vmem:[#allocation2 + $0x231] sm:$0xff]
        %v1085 = vlaneseq
        %v1086 = vshrl.u32 %v1085, 7
        %v1087 = vsub.s32 2, %v1086
        %v1088 = vrot.slane %v438, %v1087
        %v1089 = vmul.f32 %v1049, %v1088
        %v1090 = vmul.f32 %v1050, %v1088
        %v1091 = vmul.f32 %v1051, %v1088
        %v1092 = vmul.f32 %v1052, %v1088
        %v1093 = vmul.f32 %v1053, %v1088
        %v1094 = vmul.f32 %v1054, %v1088
        %v1095 = vmul.f32 %v1055, %v1088
        %v1096 = vmul.f32 %v1056, %v1088
        %v1097 = vmul.f32 %v1057, %v1088
        %v1098 = vmul.f32 %v1058, %v1088
        %v1099 = vmul.f32 %v1059, %v1088
        %v1100 = vmul.f32 %v1060, %v1088
        %v1101 = vmul.f32 %v1061, %v1088
        %v1102 = vmul.f32 %v1062, %v1088
        %v1103 = vmul.f32 %v1063, %v1088
        %v1104 = vmul.f32 %v1064, %v1088
        %v1105 = vmul.f32 %v1065, %v1088
        %v1106 = vmul.f32 %v1066, %v1088
        %v1107 = vmul.f32 %v1067, %v1088
        %v1108 = vmul.f32 %v1068, %v1088
        %v1109 = vmul.f32 %v1069, %v1088
        %v1110 = vmul.f32 %v1070, %v1088
        %v1111 = vmul.f32 %v1071, %v1088
        %v1112 = vmul.f32 %v1072, %v1088
        %v1113 = vmul.f32 %v1073, %v1088
        %v1114 = vmul.f32 %v1074, %v1088
        %v1115 = vmul.f32 %v1075, %v1088
        %v1116 = vmul.f32 %v1076, %v1088
        %v1117 = vmul.f32 %v1077, %v1088
        %v1118 = vmul.f32 %v1078, %v1088
        %v1119 = vmul.f32 %v1079, %v1088
        %v1120 = vmul.f32 %v1080, %v1088
        %v1121 = vadd.f32 %v1017, %v1089
        %v1122 = vadd.f32 %v1018, %v1090
        %v1123 = vadd.f32 %v1019, %v1091
        %v1124 = vadd.f32 %v1020, %v1092
        %v1125 = vadd.f32 %v1021, %v1093
        %v1126 = vadd.f32 %v1022, %v1094
        %v1127 = vadd.f32 %v1023, %v1095
        %v1128 = vadd.f32 %v1024, %v1096
        %v1129 = vadd.f32 %v1025, %v1097
        %v1130 = vadd.f32 %v1026, %v1098
        %v1131 = vadd.f32 %v1027, %v1099
        %v1132 = vadd.f32 %v1028, %v1100
        %v1133 = vadd.f32 %v1029, %v1101
        %v1134 = vadd.f32 %v1030, %v1102
        %v1135 = vadd.f32 %v1031, %v1103
        %v1136 = vadd.f32 %v1032, %v1104
        %v1137 = vadd.f32 %v1033, %v1105
        %v1138 = vadd.f32 %v1034, %v1106
        %v1139 = vadd.f32 %v1035, %v1107
        %v1140 = vadd.f32 %v1036, %v1108
        %v1141 = vadd.f32 %v1037, %v1109
        %v1142 = vadd.f32 %v1038, %v1110
        %v1143 = vadd.f32 %v1039, %v1111
        %v1144 = vadd.f32 %v1040, %v1112
        %v1145 = vadd.f32 %v1041, %v1113
        %v1146 = vadd.f32 %v1042, %v1114
        %v1147 = vadd.f32 %v1043, %v1115
        %v1148 = vadd.f32 %v1044, %v1116
        %v1149 = vadd.f32 %v1045, %v1117
        %v1150 = vadd.f32 %v1046, %v1118
        %v1151 = vadd.f32 %v1047, %v1119
        %v1152 = vadd.f32 %v1048, %v1120
        %v1153 = vlaneseq
        %v1154 = vshrl.u32 %v1153, 7
        %v1155 = vsub.s32 2, %v1154
        %v1156 = vrot.slane %v439, %v1155
        %v1157 = vmul.f32 %v1051, %v1156
        %v1158 = vmul.f32 %v1052, %v1156
        %v1159 = vmul.f32 %v1053, %v1156
        %v1160 = vmul.f32 %v1054, %v1156
        %v1161 = vmul.f32 %v1055, %v1156
        %v1162 = vmul.f32 %v1056, %v1156
        %v1163 = vmul.f32 %v1057, %v1156
        %v1164 = vmul.f32 %v1058, %v1156
        %v1165 = vmul.f32 %v1059, %v1156
        %v1166 = vmul.f32 %v1060, %v1156
        %v1167 = vmul.f32 %v1061, %v1156
        %v1168 = vmul.f32 %v1062, %v1156
        %v1169 = vmul.f32 %v1063, %v1156
        %v1170 = vmul.f32 %v1064, %v1156
        %v1171 = vmul.f32 %v1065, %v1156
        %v1172 = vmul.f32 %v1066, %v1156
        %v1173 = vmul.f32 %v1067, %v1156
        %v1174 = vmul.f32 %v1068, %v1156
        %v1175 = vmul.f32 %v1069, %v1156
        %v1176 = vmul.f32 %v1070, %v1156
        %v1177 = vmul.f32 %v1071, %v1156
        %v1178 = vmul.f32 %v1072, %v1156
        %v1179 = vmul.f32 %v1073, %v1156
        %v1180 = vmul.f32 %v1074, %v1156
        %v1181 = vmul.f32 %v1075, %v1156
        %v1182 = vmul.f32 %v1076, %v1156
        %v1183 = vmul.f32 %v1077, %v1156
        %v1184 = vmul.f32 %v1078, %v1156
        %v1185 = vmul.f32 %v1079, %v1156
        %v1186 = vmul.f32 %v1080, %v1156
        %v1187 = vmul.f32 %v1081, %v1156
        %v1188 = vmul.f32 %v1082, %v1156
        %v1189 = vadd.f32 %v1121, %v1157
        %v1190 = vadd.f32 %v1122, %v1158
        %v1191 = vadd.f32 %v1123, %v1159
        %v1192 = vadd.f32 %v1124, %v1160
        %v1193 = vadd.f32 %v1125, %v1161
        %v1194 = vadd.f32 %v1126, %v1162
        %v1195 = vadd.f32 %v1127, %v1163
        %v1196 = vadd.f32 %v1128, %v1164
        %v1197 = vadd.f32 %v1129, %v1165
        %v1198 = vadd.f32 %v1130, %v1166
        %v1199 = vadd.f32 %v1131, %v1167
        %v1200 = vadd.f32 %v1132, %v1168
        %v1201 = vadd.f32 %v1133, %v1169
        %v1202 = vadd.f32 %v1134, %v1170
        %v1203 = vadd.f32 %v1135, %v1171
        %v1204 = vadd.f32 %v1136, %v1172
        %v1205 = vadd.f32 %v1137, %v1173
        %v1206 = vadd.f32 %v1138, %v1174
        %v1207 = vadd.f32 %v1139, %v1175
        %v1208 = vadd.f32 %v1140, %v1176
        %v1209 = vadd.f32 %v1141, %v1177
        %v1210 = vadd.f32 %v1142, %v1178
        %v1211 = vadd.f32 %v1143, %v1179
        %v1212 = vadd.f32 %v1144, %v1180
        %v1213 = vadd.f32 %v1145, %v1181
        %v1214 = vadd.f32 %v1146, %v1182
        %v1215 = vadd.f32 %v1147, %v1183
        %v1216 = vadd.f32 %v1148, %v1184
        %v1217 = vadd.f32 %v1149, %v1185
        %v1218 = vadd.f32 %v1150, %v1186
        %v1219 = vadd.f32 %v1151, %v1187
        %v1220 = vadd.f32 %v1152, %v1188
        %v1221 = vlaneseq
        %v1222 = vshrl.u32 %v1221, 7
        %v1223 = vsub.s32 2, %v1222
        %v1224 = vrot.slane %v440, %v1223
        %v1225 = vmul.f32 %v1053, %v1224
        %v1226 = vmul.f32 %v1054, %v1224
        %v1227 = vmul.f32 %v1055, %v1224
        %v1228 = vmul.f32 %v1056, %v1224
        %v1229 = vmul.f32 %v1057, %v1224
        %v1230 = vmul.f32 %v1058, %v1224
        %v1231 = vmul.f32 %v1059, %v1224
        %v1232 = vmul.f32 %v1060, %v1224
        %v1233 = vmul.f32 %v1061, %v1224
        %v1234 = vmul.f32 %v1062, %v1224
        %v1235 = vmul.f32 %v1063, %v1224
        %v1236 = vmul.f32 %v1064, %v1224
        %v1237 = vmul.f32 %v1065, %v1224
        %v1238 = vmul.f32 %v1066, %v1224
        %v1239 = vmul.f32 %v1067, %v1224
        %v1240 = vmul.f32 %v1068, %v1224
        %v1241 = vmul.f32 %v1069, %v1224
        %v1242 = vmul.f32 %v1070, %v1224
        %v1243 = vmul.f32 %v1071, %v1224
        %v1244 = vmul.f32 %v1072, %v1224
        %v1245 = vmul.f32 %v1073, %v1224
        %v1246 = vmul.f32 %v1074, %v1224
        %v1247 = vmul.f32 %v1075, %v1224
        %v1248 = vmul.f32 %v1076, %v1224
        %v1249 = vmul.f32 %v1077, %v1224
        %v1250 = vmul.f32 %v1078, %v1224
        %v1251 = vmul.f32 %v1079, %v1224
        %v1252 = vmul.f32 %v1080, %v1224
        %v1253 = vmul.f32 %v1081, %v1224
        %v1254 = vmul.f32 %v1082, %v1224
        %v1255 = vmul.f32 %v1083, %v1224
        %v1256 = vmul.f32 %v1084, %v1224
        %v1257 = vadd.f32 %v1189, %v1225
        %v1258 = vadd.f32 %v1190, %v1226
        %v1259 = vadd.f32 %v1191, %v1227
        %v1260 = vadd.f32 %v1192, %v1228
        %v1261 = vadd.f32 %v1193, %v1229
        %v1262 = vadd.f32 %v1194, %v1230
        %v1263 = vadd.f32 %v1195, %v1231
        %v1264 = vadd.f32 %v1196, %v1232
        %v1265 = vadd.f32 %v1197, %v1233
        %v1266 = vadd.f32 %v1198, %v1234
        %v1267 = vadd.f32 %v1199, %v1235
        %v1268 = vadd.f32 %v1200, %v1236
        %v1269 = vadd.f32 %v1201, %v1237
        %v1270 = vadd.f32 %v1202, %v1238
        %v1271 = vadd.f32 %v1203, %v1239
        %v1272 = vadd.f32 %v1204, %v1240
        %v1273 = vadd.f32 %v1205, %v1241
        %v1274 = vadd.f32 %v1206, %v1242
        %v1275 = vadd.f32 %v1207, %v1243
        %v1276 = vadd.f32 %v1208, %v1244
        %v1277 = vadd.f32 %v1209, %v1245
        %v1278 = vadd.f32 %v1210, %v1246
        %v1279 = vadd.f32 %v1211, %v1247
        %v1280 = vadd.f32 %v1212, %v1248
        %v1281 = vadd.f32 %v1213, %v1249
        %v1282 = vadd.f32 %v1214, %v1250
        %v1283 = vadd.f32 %v1215, %v1251
        %v1284 = vadd.f32 %v1216, %v1252
        %v1285 = vadd.f32 %v1217, %v1253
        %v1286 = vadd.f32 %v1218, %v1254
        %v1287 = vadd.f32 %v1219, %v1255
        %v1288 = vadd.f32 %v1220, %v1256
        %v1289 = vpack.c.bf16 %v1258, %v1257
        %v1290 = vpack.c.bf16 %v1260, %v1259
        %v1291 = vpack.c.bf16 %v1262, %v1261
        %v1292 = vpack.c.bf16 %v1264, %v1263
        %v1293 = vpack.c.bf16 %v1266, %v1265
        %v1294 = vpack.c.bf16 %v1268, %v1267
        %v1295 = vpack.c.bf16 %v1270, %v1269
        %v1296 = vpack.c.bf16 %v1272, %v1271
        %v1297 = vpack.c.bf16 %v1274, %v1273
        %v1298 = vpack.c.bf16 %v1276, %v1275
        %v1299 = vpack.c.bf16 %v1278, %v1277
        %v1300 = vpack.c.bf16 %v1280, %v1279
        %v1301 = vpack.c.bf16 %v1282, %v1281
        %v1302 = vpack.c.bf16 %v1284, %v1283
        %v1303 = vpack.c.bf16 %v1286, %v1285
        %v1304 = vpack.c.bf16 %v1288, %v1287
        %v1306 = vlaneseq
        %v1307 = vshrl.u32 %v1306, 7
        %v1308 = vsub.s32 0, %v1307
        %v1309 = vrot.slane %v445, %v1308
        %v1315 = vunpack.c.l.b16 %v441
        %v1316 = vunpack.c.l.b16 %v442
        %v1317 = vunpack.c.l.b16 %v443
        %v1318 = vunpack.c.l.b16 %v444
        %v1319 = vpack.c.b16 %v1316, %v1315
        %v1320 = vpack.c.b16 %v1318, %v1317
        %v1324 = vsel %vm446, %v1289, 0
        %v1327 = vsel %vm446, %v1290, 0
        %v1330 = vsel %vm446, %v1291, 0
        %v1333 = vsel %vm446, %v1292, 0
        %v1336 = vsel %vm446, %v1293, 0
        %v1339 = vsel %vm446, %v1294, 0
        %v1342 = vsel %vm446, %v1295, 0
        %v1345 = vsel %vm446, %v1296, 0
        %v1348 = vsel %vm446, %v1297, 0
        %v1351 = vsel %vm446, %v1298, 0
        %v1354 = vsel %vm446, %v1299, 0
        %v1357 = vsel %vm446, %v1300, 0
        %v1360 = vsel %vm446, %v1301, 0
        %v1363 = vsel %vm446, %v1302, 0
        %v1366 = vsel %vm446, %v1303, 0
        %v1369 = vsel %vm446, %v1304, 0
        %1371 = vmatprep.subr.bf16.mxu0 0
        %1372 = vmatpush1.bf16.msra.mxu0 %v1319
        %1373 = vmatprep.subr.bf16.mxu0 0
        %1374 = vmatpush1.bf16.msra.mxu0 %v1320
        %1375 = vmatprep.subr.bf16.mxu0 0
        %1376 = vmatpush1.bf16.msra.mxu0 0
        %1377 = vmatprep.subr.bf16.mxu0 0
        %1378 = vmatpush1.bf16.msra.mxu0 0
        %1379 = vmatprep.subr.bf16.mxu0 0
        %1380 = vmatpush1.bf16.msra.mxu0 0
        %1381 = vmatprep.subr.bf16.mxu0 0
        %1382 = vmatpush1.bf16.msra.mxu0 0
        %1383 = vmatprep.subr.bf16.mxu0 0
        %1384 = vmatpush1.bf16.msra.mxu0 0
        %1385 = vmatprep.subr.bf16.mxu0 0
        %1386 = vmatpush1.bf16.msra.mxu0 0
        %1387 = vmatprep.subr.bf16.mxu0 0
        %1388 = vmatpush1.bf16.msra.mxu0 0
        %1389 = vmatprep.subr.bf16.mxu0 0
        %1390 = vmatpush1.bf16.msra.mxu0 0
        %1391 = vmatprep.subr.bf16.mxu0 0
        %1392 = vmatpush1.bf16.msra.mxu0 0
        %1393 = vmatprep.subr.bf16.mxu0 0
        %1394 = vmatpush1.bf16.msra.mxu0 0
        %1395 = vmatprep.subr.bf16.mxu0 0
        %1396 = vmatpush1.bf16.msra.mxu0 0
        %1397 = vmatprep.subr.bf16.mxu0 0
        %1398 = vmatpush1.bf16.msra.mxu0 0
        %1399 = vmatprep.subr.bf16.mxu0 0
        %1400 = vmatpush1.bf16.msra.mxu0 0
        %1401 = vmatprep.subr.bf16.mxu0 0
        %1402 = vmatpush1.bf16.msra.mxu0 0
        %1403 = vmatprep.mubr.bf16.mxu0 0
        %1404 = vmatmul.mubr.bf16.gmra.mrb[0].mxu0 %v1324
        %v1405 = vpop.f32.mrb[0].mxu0
        %v1406 = vadd.f32 %v1309, %v1405
        %v1407 = vpop.f32.mrb[0].mxu0
        %v1408 = vpop.f32.mrb[0].mxu0
        %v1409 = vadd.f32 %v1309, %v1408
        %v1410 = vpop.f32.mrb[0].mxu0
        %1411 = vmatprep.mubr.bf16.mxu0 0
        %1412 = vmatmul.mubr.bf16.gmra.mrb[0].mxu0 %v1327
        %v1413 = vpop.f32.mrb[0].mxu0
        %v1414 = vadd.f32 %v1309, %v1413
        %v1415 = vpop.f32.mrb[0].mxu0
        %v1416 = vpop.f32.mrb[0].mxu0
        %v1417 = vadd.f32 %v1309, %v1416
        %v1418 = vpop.f32.mrb[0].mxu0
        %1419 = vmatprep.mubr.bf16.mxu0 0
        %1420 = vmatmul.mubr.bf16.gmra.mrb[0].mxu0 %v1330
        %v1421 = vpop.f32.mrb[0].mxu0
        %v1422 = vadd.f32 %v1309, %v1421
        %v1423 = vpop.f32.mrb[0].mxu0
        %v1424 = vpop.f32.mrb[0].mxu0
        %v1425 = vadd.f32 %v1309, %v1424
        %v1426 = vpop.f32.mrb[0].mxu0
        %1427 = vmatprep.mubr.bf16.mxu0 0
        %1428 = vmatmul.mubr.bf16.gmra.mrb[0].mxu0 %v1333
        %v1429 = vpop.f32.mrb[0].mxu0
        %v1430 = vadd.f32 %v1309, %v1429
        %v1431 = vpop.f32.mrb[0].mxu0
        %v1432 = vpop.f32.mrb[0].mxu0
        %v1433 = vadd.f32 %v1309, %v1432
        %v1434 = vpop.f32.mrb[0].mxu0
        %1435 = vmatprep.mubr.bf16.mxu0 0
        %1436 = vmatmul.mubr.bf16.gmra.mrb[0].mxu0 %v1336
        %v1437 = vpop.f32.mrb[0].mxu0
        %v1438 = vadd.f32 %v1309, %v1437
        %v1439 = vpop.f32.mrb[0].mxu0
        %v1440 = vpop.f32.mrb[0].mxu0
        %v1441 = vadd.f32 %v1309, %v1440
        %v1442 = vpop.f32.mrb[0].mxu0
        %1443 = vmatprep.mubr.bf16.mxu0 0
        %1444 = vmatmul.mubr.bf16.gmra.mrb[0].mxu0 %v1339
        %v1445 = vpop.f32.mrb[0].mxu0
        %v1446 = vadd.f32 %v1309, %v1445
        %v1447 = vpop.f32.mrb[0].mxu0
        %v1448 = vpop.f32.mrb[0].mxu0
        %v1449 = vadd.f32 %v1309, %v1448
        %v1450 = vpop.f32.mrb[0].mxu0
        %1451 = vmatprep.mubr.bf16.mxu0 0
        %1452 = vmatmul.mubr.bf16.gmra.mrb[0].mxu0 %v1342
        %v1453 = vpop.f32.mrb[0].mxu0
        %v1454 = vadd.f32 %v1309, %v1453
        %v1455 = vpop.f32.mrb[0].mxu0
        %v1456 = vpop.f32.mrb[0].mxu0
        %v1457 = vadd.f32 %v1309, %v1456
        %v1458 = vpop.f32.mrb[0].mxu0
        %1459 = vmatprep.mubr.bf16.mxu0 0
        %1460 = vmatmul.mubr.bf16.gmra.mrb[0].mxu0 %v1345
        %v1461 = vpop.f32.mrb[0].mxu0
        %v1462 = vadd.f32 %v1309, %v1461
        %v1463 = vpop.f32.mrb[0].mxu0
        %v1464 = vpop.f32.mrb[0].mxu0
        %v1465 = vadd.f32 %v1309, %v1464
        %v1466 = vpop.f32.mrb[0].mxu0
        %1467 = vmatprep.mubr.bf16.mxu0 0
        %1468 = vmatmul.mubr.bf16.gmra.mrb[0].mxu0 %v1348
        %v1469 = vpop.f32.mrb[0].mxu0
        %v1470 = vadd.f32 %v1309, %v1469
        %v1471 = vpop.f32.mrb[0].mxu0
        %v1472 = vpop.f32.mrb[0].mxu0
        %v1473 = vadd.f32 %v1309, %v1472
        %v1474 = vpop.f32.mrb[0].mxu0
        %1475 = vmatprep.mubr.bf16.mxu0 0
        %1476 = vmatmul.mubr.bf16.gmra.mrb[0].mxu0 %v1351
        %v1477 = vpop.f32.mrb[0].mxu0
        %v1478 = vadd.f32 %v1309, %v1477
        %v1479 = vpop.f32.mrb[0].mxu0
        %v1480 = vpop.f32.mrb[0].mxu0
        %v1481 = vadd.f32 %v1309, %v1480
        %v1482 = vpop.f32.mrb[0].mxu0
        %1483 = vmatprep.mubr.bf16.mxu0 0
        %1484 = vmatmul.mubr.bf16.gmra.mrb[0].mxu0 %v1354
        %v1485 = vpop.f32.mrb[0].mxu0
        %v1486 = vadd.f32 %v1309, %v1485
        %v1487 = vpop.f32.mrb[0].mxu0
        %v1488 = vpop.f32.mrb[0].mxu0
        %v1489 = vadd.f32 %v1309, %v1488
        %v1490 = vpop.f32.mrb[0].mxu0
        %1491 = vmatprep.mubr.bf16.mxu0 0
        %1492 = vmatmul.mubr.bf16.gmra.mrb[0].mxu0 %v1357
        %v1493 = vpop.f32.mrb[0].mxu0
        %v1494 = vadd.f32 %v1309, %v1493
        %v1495 = vpop.f32.mrb[0].mxu0
        %v1496 = vpop.f32.mrb[0].mxu0
        %v1497 = vadd.f32 %v1309, %v1496
        %v1498 = vpop.f32.mrb[0].mxu0
        %1499 = vmatprep.mubr.bf16.mxu0 0
        %1500 = vmatmul.mubr.bf16.gmra.mrb[0].mxu0 %v1360
        %v1501 = vpop.f32.mrb[0].mxu0
        %v1502 = vadd.f32 %v1309, %v1501
        %v1503 = vpop.f32.mrb[0].mxu0
        %v1504 = vpop.f32.mrb[0].mxu0
        %v1505 = vadd.f32 %v1309, %v1504
        %v1506 = vpop.f32.mrb[0].mxu0
        %1507 = vmatprep.mubr.bf16.mxu0 0
        %1508 = vmatmul.mubr.bf16.gmra.mrb[0].mxu0 %v1363
        %v1509 = vpop.f32.mrb[0].mxu0
        %v1510 = vadd.f32 %v1309, %v1509
        %v1511 = vpop.f32.mrb[0].mxu0
        %v1512 = vpop.f32.mrb[0].mxu0
        %v1513 = vadd.f32 %v1309, %v1512
        %v1514 = vpop.f32.mrb[0].mxu0
        %1515 = vmatprep.mubr.bf16.mxu0 0
        %1516 = vmatmul.mubr.bf16.gmra.mrb[0].mxu0 %v1366
        %v1517 = vpop.f32.mrb[0].mxu0
        %v1518 = vadd.f32 %v1309, %v1517
        %v1519 = vpop.f32.mrb[0].mxu0
        %v1520 = vpop.f32.mrb[0].mxu0
        %v1521 = vadd.f32 %v1309, %v1520
        %v1522 = vpop.f32.mrb[0].mxu0
        %1523 = vmatprep.mubr.bf16.mxu0 0
        %1524 = vmatmul.mubr.bf16.gmra.mrb[0].mxu0 %v1369
        %v1525 = vpop.f32.mrb[0].mxu0
        %v1526 = vadd.f32 %v1309, %v1525
        %v1527 = vpop.f32.mrb[0].mxu0
        %v1528 = vpop.f32.mrb[0].mxu0
        %v1529 = vadd.f32 %v1309, %v1528
        %v1530 = vpop.f32.mrb[0].mxu0
        %1531 = vdwg.mxu0
        %v1532 = vadd.f32 %v1406, 3.0
        %v1533 = vadd.f32 %v1409, 3.0
        %v1534 = vadd.f32 %v1414, 3.0
        %v1535 = vadd.f32 %v1417, 3.0
        %v1536 = vadd.f32 %v1422, 3.0
        %v1537 = vadd.f32 %v1425, 3.0
        %v1538 = vadd.f32 %v1430, 3.0
        %v1539 = vadd.f32 %v1433, 3.0
        %v1540 = vadd.f32 %v1438, 3.0
        %v1541 = vadd.f32 %v1441, 3.0
        %v1542 = vadd.f32 %v1446, 3.0
        %v1543 = vadd.f32 %v1449, 3.0
        %v1544 = vadd.f32 %v1454, 3.0
        %v1545 = vadd.f32 %v1457, 3.0
        %v1546 = vadd.f32 %v1462, 3.0
        %v1547 = vadd.f32 %v1465, 3.0
        %v1548 = vadd.f32 %v1470, 3.0
        %v1549 = vadd.f32 %v1473, 3.0
        %v1550 = vadd.f32 %v1478, 3.0
        %v1551 = vadd.f32 %v1481, 3.0
        %v1552 = vadd.f32 %v1486, 3.0
        %v1553 = vadd.f32 %v1489, 3.0
        %v1554 = vadd.f32 %v1494, 3.0
        %v1555 = vadd.f32 %v1497, 3.0
        %v1556 = vadd.f32 %v1502, 3.0
        %v1557 = vadd.f32 %v1505, 3.0
        %v1558 = vadd.f32 %v1510, 3.0
        %v1559 = vadd.f32 %v1513, 3.0
        %v1560 = vadd.f32 %v1518, 3.0
        %v1561 = vadd.f32 %v1521, 3.0
        %v1562 = vadd.f32 %v1526, 3.0
        %v1563 = vadd.f32 %v1529, 3.0
        %v1564 = vmax.f32 %v1532, 0.0
        %v1565 = vmax.f32 %v1533, 0.0
        %v1566 = vmax.f32 %v1534, 0.0
        %v1567 = vmax.f32 %v1535, 0.0
        %v1568 = vmax.f32 %v1536, 0.0
        %v1569 = vmax.f32 %v1537, 0.0
        %v1570 = vmax.f32 %v1538, 0.0
        %v1571 = vmax.f32 %v1539, 0.0
        %v1572 = vmax.f32 %v1540, 0.0
        %v1573 = vmax.f32 %v1541, 0.0
        %v1574 = vmax.f32 %v1542, 0.0
        %v1575 = vmax.f32 %v1543, 0.0
        %v1576 = vmax.f32 %v1544, 0.0
        %v1577 = vmax.f32 %v1545, 0.0
        %v1578 = vmax.f32 %v1546, 0.0
        %v1579 = vmax.f32 %v1547, 0.0
        %v1580 = vmax.f32 %v1548, 0.0
        %v1581 = vmax.f32 %v1549, 0.0
        %v1582 = vmax.f32 %v1550, 0.0
        %v1583 = vmax.f32 %v1551, 0.0
        %v1584 = vmax.f32 %v1552, 0.0
        %v1585 = vmax.f32 %v1553, 0.0
        %v1586 = vmax.f32 %v1554, 0.0
        %v1587 = vmax.f32 %v1555, 0.0
        %v1588 = vmax.f32 %v1556, 0.0
        %v1589 = vmax.f32 %v1557, 0.0
        %v1590 = vmax.f32 %v1558, 0.0
        %v1591 = vmax.f32 %v1559, 0.0
        %v1592 = vmax.f32 %v1560, 0.0
        %v1593 = vmax.f32 %v1561, 0.0
        %v1594 = vmax.f32 %v1562, 0.0
        %v1595 = vmax.f32 %v1563, 0.0
        %v1596 = vmin.f32 %v1564, 6.0
        %v1597 = vmin.f32 %v1565, 6.0
        %v1598 = vmin.f32 %v1566, 6.0
        %v1599 = vmin.f32 %v1567, 6.0
        %v1600 = vmin.f32 %v1568, 6.0
        %v1601 = vmin.f32 %v1569, 6.0
        %v1602 = vmin.f32 %v1570, 6.0
        %v1603 = vmin.f32 %v1571, 6.0
        %v1604 = vmin.f32 %v1572, 6.0
        %v1605 = vmin.f32 %v1573, 6.0
        %v1606 = vmin.f32 %v1574, 6.0
        %v1607 = vmin.f32 %v1575, 6.0
        %v1608 = vmin.f32 %v1576, 6.0
        %v1609 = vmin.f32 %v1577, 6.0
        %v1610 = vmin.f32 %v1578, 6.0
        %v1611 = vmin.f32 %v1579, 6.0
        %v1612 = vmin.f32 %v1580, 6.0
        %v1613 = vmin.f32 %v1581, 6.0
        %v1614 = vmin.f32 %v1582, 6.0
        %v1615 = vmin.f32 %v1583, 6.0
        %v1616 = vmin.f32 %v1584, 6.0
        %v1617 = vmin.f32 %v1585, 6.0
        %v1618 = vmin.f32 %v1586, 6.0
        %v1619 = vmin.f32 %v1587, 6.0
        %v1620 = vmin.f32 %v1588, 6.0
        %v1621 = vmin.f32 %v1589, 6.0
        %v1622 = vmin.f32 %v1590, 6.0
        %v1623 = vmin.f32 %v1591, 6.0
        %v1624 = vmin.f32 %v1592, 6.0
        %v1625 = vmin.f32 %v1593, 6.0
        %v1626 = vmin.f32 %v1594, 6.0
        %v1627 = vmin.f32 %v1595, 6.0
        %v1628 = vmul.f32 %v1406, %v1596
        %v1629 = vmul.f32 %v1409, %v1597
        %v1630 = vmul.f32 %v1414, %v1598
        %v1631 = vmul.f32 %v1417, %v1599
        %v1632 = vmul.f32 %v1422, %v1600
        %v1633 = vmul.f32 %v1425, %v1601
        %v1634 = vmul.f32 %v1430, %v1602
        %v1635 = vmul.f32 %v1433, %v1603
        %v1636 = vmul.f32 %v1438, %v1604
        %v1637 = vmul.f32 %v1441, %v1605
        %v1638 = vmul.f32 %v1446, %v1606
        %v1639 = vmul.f32 %v1449, %v1607
        %v1640 = vmul.f32 %v1454, %v1608
        %v1641 = vmul.f32 %v1457, %v1609
        %v1642 = vmul.f32 %v1462, %v1610
        %v1643 = vmul.f32 %v1465, %v1611
        %v1644 = vmul.f32 %v1470, %v1612
        %v1645 = vmul.f32 %v1473, %v1613
        %v1646 = vmul.f32 %v1478, %v1614
        %v1647 = vmul.f32 %v1481, %v1615
        %v1648 = vmul.f32 %v1486, %v1616
        %v1649 = vmul.f32 %v1489, %v1617
        %v1650 = vmul.f32 %v1494, %v1618
        %v1651 = vmul.f32 %v1497, %v1619
        %v1652 = vmul.f32 %v1502, %v1620
        %v1653 = vmul.f32 %v1505, %v1621
        %v1654 = vmul.f32 %v1510, %v1622
        %v1655 = vmul.f32 %v1513, %v1623
        %v1656 = vmul.f32 %v1518, %v1624
        %v1657 = vmul.f32 %v1521, %v1625
        %v1658 = vmul.f32 %v1526, %v1626
        %v1659 = vmul.f32 %v1529, %v1627
        %v1660 = vmul.f32 %v1628, 0.16666667
        %v1661 = vmul.f32 %v1629, 0.16666667
        %v1662 = vmul.f32 %v1630, 0.16666667
        %v1663 = vmul.f32 %v1631, 0.16666667
        %v1664 = vmul.f32 %v1632, 0.16666667
        %v1665 = vmul.f32 %v1633, 0.16666667
        %v1666 = vmul.f32 %v1634, 0.16666667
        %v1667 = vmul.f32 %v1635, 0.16666667
        %v1668 = vmul.f32 %v1636, 0.16666667
        %v1669 = vmul.f32 %v1637, 0.16666667
        %v1670 = vmul.f32 %v1638, 0.16666667
        %v1671 = vmul.f32 %v1639, 0.16666667
        %v1672 = vmul.f32 %v1640, 0.16666667
        %v1673 = vmul.f32 %v1641, 0.16666667
        %v1674 = vmul.f32 %v1642, 0.16666667
        %v1675 = vmul.f32 %v1643, 0.16666667
        %v1676 = vmul.f32 %v1644, 0.16666667
        %v1677 = vmul.f32 %v1645, 0.16666667
        %v1678 = vmul.f32 %v1646, 0.16666667
        %v1679 = vmul.f32 %v1647, 0.16666667
        %v1680 = vmul.f32 %v1648, 0.16666667
        %v1681 = vmul.f32 %v1649, 0.16666667
        %v1682 = vmul.f32 %v1650, 0.16666667
        %v1683 = vmul.f32 %v1651, 0.16666667
        %v1684 = vmul.f32 %v1652, 0.16666667
        %v1685 = vmul.f32 %v1653, 0.16666667
        %v1686 = vmul.f32 %v1654, 0.16666667
        %v1687 = vmul.f32 %v1655, 0.16666667
        %v1688 = vmul.f32 %v1656, 0.16666667
        %v1689 = vmul.f32 %v1657, 0.16666667
        %v1690 = vmul.f32 %v1658, 0.16666667
        %v1691 = vmul.f32 %v1659, 0.16666667
        %1692 = vst.msk [vmem:[%s426] sm:$0xff] %vm446, %v1660
        %1693 = vst.msk [vmem:[%s426 + $0x8] sm:$0xff] %vm446, %v1661
        %1694 = vst.msk [vmem:[%s426 + $0x10] sm:$0xff] %vm446, %v1662
        %1695 = vst.msk [vmem:[%s426 + $0x18] sm:$0xff] %vm446, %v1663
        %1696 = vst.msk [vmem:[%s426 + $0x20] sm:$0xff] %vm446, %v1664
        %1697 = vst.msk [vmem:[%s426 + $0x28] sm:$0xff] %vm446, %v1665
        %1698 = vst.msk [vmem:[%s426 + $0x30] sm:$0xff] %vm446, %v1666
        %1699 = vst.msk [vmem:[%s426 + $0x38] sm:$0xff] %vm446, %v1667
        %1700 = vst.msk [vmem:[%s426 + $0x40] sm:$0xff] %vm446, %v1668
        %1701 = vst.msk [vmem:[%s426 + $0x48] sm:$0xff] %vm446, %v1669
        %1702 = vst.msk [vmem:[%s426 + $0x50] sm:$0xff] %vm446, %v1670
        %1703 = vst.msk [vmem:[%s426 + $0x58] sm:$0xff] %vm446, %v1671
        %1704 = vst.msk [vmem:[%s426 + $0x60] sm:$0xff] %vm446, %v1672
        %1705 = vst.msk [vmem:[%s426 + $0x68] sm:$0xff] %vm446, %v1673
        %1706 = vst.msk [vmem:[%s426 + $0x70] sm:$0xff] %vm446, %v1674
        %1707 = vst.msk [vmem:[%s426 + $0x78] sm:$0xff] %vm446, %v1675
        %1708 = vst.msk [vmem:[%s426 + $0x80] sm:$0xff] %vm446, %v1676
        %1709 = vst.msk [vmem:[%s426 + $0x88] sm:$0xff] %vm446, %v1677
        %1710 = vst.msk [vmem:[%s426 + $0x90] sm:$0xff] %vm446, %v1678
        %1711 = vst.msk [vmem:[%s426 + $0x98] sm:$0xff] %vm446, %v1679
        %1712 = vst.msk [vmem:[%s426 + $0xa0] sm:$0xff] %vm446, %v1680
        %1713 = vst.msk [vmem:[%s426 + $0xa8] sm:$0xff] %vm446, %v1681
        %1714 = vst.msk [vmem:[%s426 + $0xb0] sm:$0xff] %vm446, %v1682
        %1715 = vst.msk [vmem:[%s426 + $0xb8] sm:$0xff] %vm446, %v1683
        %1716 = vst.msk [vmem:[%s426 + $0xc0] sm:$0xff] %vm446, %v1684
        %1717 = vst.msk [vmem:[%s426 + $0xc8] sm:$0xff] %vm446, %v1685
        %1718 = vst.msk [vmem:[%s426 + $0xd0] sm:$0xff] %vm446, %v1686
        %1719 = vst.msk [vmem:[%s426 + $0xd8] sm:$0xff] %vm446, %v1687
        %1720 = vst.msk [vmem:[%s426 + $0xe0] sm:$0xff] %vm446, %v1688
        %1721 = vst.msk [vmem:[%s426 + $0xe8] sm:$0xff] %vm446, %v1689
        %1722 = vst.msk [vmem:[%s426 + $0xf0] sm:$0xff] %vm446, %v1690
        %1723 = vst.msk [vmem:[%s426 + $0xf8] sm:$0xff] %vm446, %v1691
        %s1724 = sand.u32 %s212, 1
        %s1725 = scalar_lea.sflag [#allocation5], %s1724
        %s1726 = sand.u32 %s212, 1
        %s1727 = smul.addr %s1726, 256
        %s1728 = scalar_lea.vmem [#allocation12], %s1727
        // Predicated region
        $region65: #{tpu_custom_call.1} parent=43 // pred_check
          %p1729 = pneg %p222
        $region66: #{tpu_custom_call.1} parent=43 // pred_check_branch
          %1731 = sbr.rel (%p1729) target = $region68
        $region67: #{tpu_custom_call.1} parent=43 // pred_region
          %s1732 = smul.u32 16, %s32
          %s1734 = ssub.s32 4096, 4096
          %1735 = vsyncadd %s1725, %s1734
          %s1736 = smul.addr %s1732, 2
          %s1737 = smul.addr %s31, 32
          %s1738 = sadd.s32 %s1736, %s1737
          %s1739 = smul.addr %s1738, 128
          %s1740 = scalar_lea.hbm %s6, %s1739
          %s1741 = sshll.u32 %s1728, 4
          %s1742 = int_to_ptr.vmem [resolvable:$true] %s1741
          %1747 = dma.vmem_to_hbm [thread:$0]  %s1742, 4096, %s1740, %s1725, 128, 128, 8
        $region68: #{tpu_custom_call.1} parent=43 // pred_fallthru
          _
      $region44: #{tpu_custom_call.1} parent=5 // pred_fallthru
        _
      %p1748 = scmp.le.s32.totalorder 2, %s22
      // Predicated region
      $region69: #{tpu_custom_call.1} parent=5 // pred_check
        %p1749 = pneg %p1748
      $region70: #{tpu_custom_call.1} parent=5 // pred_check_branch
        %1751 = sbr.rel (%p1749) target = $region72
      $region71: #{tpu_custom_call.1} parent=5 // pred_region
        %s1752 = ssub.s32 %s22, 2
        // Predicated region
        $region73: #{tpu_custom_call.1} parent=71 // pred_check
          %p1753 = pneg %p228
        $region74: #{tpu_custom_call.1} parent=71 // pred_check_branch
          %1755 = sbr.rel (%p1753) target = $region76
        $region75: #{tpu_custom_call.1} parent=71 // pred_region
          %s1756 = sand.u32 %s213, 1
          %s1757 = scalar_lea.sflag [#allocation5], %s1756
          %s1758 = sand.u32 %s213, 1
          %s1759 = smul.addr %s1758, 256
          %s1760 = scalar_lea.vmem [#allocation12], %s1759
          %1761 = dma.done %s1757, 4096
        $region76: #{tpu_custom_call.1} parent=71 // pred_fallthru
          _
      $region72: #{tpu_custom_call.1} parent=5 // pred_fallthru
        _
    $region6: #{tpu_custom_call.1} parent=1 // loop_footer
      %s26 = sadd.s32 1, %s22
    $region7: #{tpu_custom_call.1} parent=1 // loop_footer_branch
      %21 = sbr.rel target = $region3
    $region8: #{tpu_custom_call.1} parent=1 // loop_exit
      _
    %1762 = vsyncpa [#allocation4], 1
    %s1763 = scalar_lea.sflag [#allocation4], 1
    %1764 = vsyncpa %s1763, 1
    %1765 = vsyncpa [#allocation7], 1
    %s1766 = scalar_lea.sflag [#allocation7], 1
    %1767 = vsyncpa %s1766, 1
    %1768 = vsyncpa [#allocation10], 1
    %1769 = vsyncpa [#allocation5], 1
    %s1770 = scalar_lea.sflag [#allocation5], 1
    %1771 = vsyncpa %s1770, 1

</llo_original>
